<compile_context>
chip_gen: v7x
topology: tpu7x:2x2x1
jax: 0.10.0
libtpu: 0.0.40
codegen_flags: <defaults>
</compile_context>

<pallas_src>
import jax
import jax.numpy as jnp
from jax.experimental import pallas as pl
from jax.experimental.pallas import tpu as pltpu

BATCH = 2
BATCH_PAD = 8                               # full f32 sublane tile
CH = 3
IMG = 16
PATCH = 4
NUM_PATCHES = (IMG // PATCH) ** 2           # 16
PATCH_DIM = CH * PATCH * PATCH              # 48
FEAT = 1024                                 # swinv2 pooled feature size
NUM_CLASSES = 102
NUM_CLASSES_PAD = 128                       # lane-dense padded output width


# ---------------------------------------------------------------------------
# Fused kernel: stand-in backbones (RGB + depth) + cat + Linear(2048 -> 102)
# ---------------------------------------------------------------------------
def _ensemble_kernel(pooled_ref, w_bb_ref, w_cls_ref, b_ref, out_ref):
    # TODO(synk): the real SwinV2 RGB/Depth backbones are external pretrained
    # HF models; a deterministic projection of the mean-pooled patches stands
    # in for each pooled (B, 1024) hook output (backbone biases are folded
    # into the effective classifier bias, so logits are unchanged).
    x1 = jnp.dot(pooled_ref[0], w_bb_ref[0],
                 preferred_element_type=jnp.float32)          # (B, 1024) f32
    x2 = jnp.dot(pooled_ref[1], w_bb_ref[1],
                 preferred_element_type=jnp.float32)          # (B, 1024) f32

    # Fused torch.cat((x1, x2), dim=1) + Linear(2048 -> 102):
    # one bf16 cast, one K=2048 MXU matmul, f32 accumulation, f32 bias add.
    x = jnp.concatenate([x1.astype(jnp.bfloat16),
                         x2.astype(jnp.bfloat16)], axis=-1)   # (B, 2048) bf16
    out_ref[...] = (jnp.dot(x, w_cls_ref[...],
                            preferred_element_type=jnp.float32)
                    + b_ref[...])


def ensemble_head(pooled, params):
    """Single grid-less pallas_call; all operands VMEM-resident (~0.7 MiB)."""
    b_pad = pooled.shape[1]
    vmem = pl.BlockSpec(memory_space=pltpu.MemorySpace.VMEM)
    flops = (2 * 2 * b_pad * PATCH_DIM * FEAT                 # two backbone dots
             + 2 * b_pad * (2 * FEAT) * NUM_CLASSES_PAD)      # classifier dot
    bytes_accessed = (pooled.size * 2
                      + params["w_bb"].size * 2
                      + params["w_cls"].size * 2
                      + params["b_eff"].size * 4
                      + b_pad * NUM_CLASSES_PAD * 4)
    return pl.pallas_call(
        _ensemble_kernel,
        out_shape=jax.ShapeDtypeStruct((b_pad, NUM_CLASSES_PAD), jnp.float32),
        in_specs=[vmem] * 4,
        out_specs=vmem,
        cost_estimate=pl.CostEstimate(flops=flops, transcendentals=0,
                                      bytes_accessed=bytes_accessed),
    )(pooled, params["w_bb"], params["w_cls"], params["b_eff"])


# ---------------------------------------------------------------------------
# Glue (reshapes / pooling / parameter setup in plain JAX)
# ---------------------------------------------------------------------------
def patchify_pool_nchw(x, patch):
    # (B, C, H, W) -> mean over patches -> (B, C*patch*patch) f32
    B, C, H, W = x.shape
    hp, wp = H // patch, W // patch
    x = x.reshape(B, C, hp, patch, wp, patch)
    x = x.transpose(0, 2, 4, 1, 3, 5)                         # (B, hp, wp, C, p, p)
    x = x.reshape(B, hp * wp, C * patch * patch).astype(jnp.float32)
    return jnp.mean(x, axis=1)                                # (B, patch_dim)


def init_params():
    k = jax.random.PRNGKey(42)
    k_rgb_w, k_rgb_b, k_dep_w, k_dep_b, k_cls_w, k_cls_b = jax.random.split(k, 6)
    s_bb = 1.0 / jnp.sqrt(PATCH_DIM)
    s_cls = 1.0 / jnp.sqrt(2 * FEAT)

    # Stand-in backbone projections (patch_dim -> 1024) and their biases.
    w_rgb = jax.random.uniform(k_rgb_w, (PATCH_DIM, FEAT), jnp.float32, -s_bb, s_bb)
    w_dep = jax.random.uniform(k_dep_w, (PATCH_DIM, FEAT), jnp.float32, -s_bb, s_bb)
    b_rgb = jax.random.uniform(k_rgb_b, (1, FEAT), jnp.float32, -s_bb, s_bb)
    b_dep = jax.random.uniform(k_dep_b, (1, FEAT), jnp.float32, -s_bb, s_bb)

    # Classifier: torch Linear weight is (out=102, in=2048); generate transposed
    # (2048, 102) and pad classes 102 -> 128 (lane-dense output tile).
    w_cls_t = jax.random.uniform(k_cls_w, (2 * FEAT, NUM_CLASSES), jnp.float32,
                                 -s_cls, s_cls)
    b_cls = jax.random.uniform(k_cls_b, (1, NUM_CLASSES), jnp.float32, -s_cls, s_cls)
    w_cls_t = jnp.pad(w_cls_t, ((0, 0), (0, NUM_CLASSES_PAD - NUM_CLASSES)))
    b_cls = jnp.pad(b_cls, ((0, 0), (0, NUM_CLASSES_PAD - NUM_CLASSES)))

    # Fold both backbone biases through the classifier into ONE f32 bias:
    #   b_eff = b_cls + b_rgb @ Wcls[:1024] + b_dep @ Wcls[1024:]
    b_eff = b_cls + b_rgb @ w_cls_t[:FEAT, :] + b_dep @ w_cls_t[FEAT:, :]

    return {
        "w_bb": jnp.stack([w_rgb, w_dep]).astype(jnp.bfloat16),   # (2, 48, 1024)
        "w_cls": w_cls_t.astype(jnp.bfloat16),                    # (2048, 128)
        "b_eff": b_eff.astype(jnp.float32),                       # (1, 128)
    }


@jax.jit
def ensemble_forward(params, pixel_values_rgb, pixel_values_depth):
    B = pixel_values_rgb.shape[0]
    # Stand-in for model_rgb(...) / model_depth(...) pooler hook inputs:
    # patchify + mean-pool in the fused jitted wrapper (tiny DMA into kernel).
    pooled_rgb = patchify_pool_nchw(pixel_values_rgb, PATCH)      # (B, 48) f32
    pooled_dep = patchify_pool_nchw(pixel_values_depth, PATCH)    # (B, 48) f32
    pooled = jnp.stack([pooled_rgb, pooled_dep])                  # (2, B, 48)
    pad = BATCH_PAD - B
    if pad > 0:                                                   # pad sublanes
        pooled = jnp.pad(pooled, ((0, 0), (0, pad), (0, 0)))
    pooled = pooled.astype(jnp.bfloat16)
    out_pad = ensemble_head(pooled, params)                       # (B_pad, 128)
    return out_pad[:B, :NUM_CLASSES]                              # (B, 102)


if __name__ == "__main__":
    key = jax.random.PRNGKey(0)
    k_rgb, k_dep = jax.random.split(key)
    pixel_values_rgb = jax.random.normal(k_rgb, (BATCH, CH, IMG, IMG), jnp.float32)
    pixel_values_depth = jax.random.normal(k_dep, (BATCH, CH, IMG, IMG), jnp.float32)

    params = init_params()
    out = ensemble_forward(params, pixel_values_rgb, pixel_values_depth)
    out = jax.block_until_ready(out)
    assert out.shape == (BATCH, NUM_CLASSES) and out.dtype == jnp.float32
    assert bool(jnp.all(jnp.isfinite(out)))
    print("KERNEL_OK")
</pallas_src>

<mosaic_0001>
module attributes {stable_mosaic.version = 11 : i64} {
  func.func @_ensemble_kernel(%arg0: memref<2x8x48xbf16, #tpu.memory_space<vmem>>, %arg1: memref<2x48x1024xbf16, #tpu.memory_space<vmem>>, %arg2: memref<2048x128xbf16, #tpu.memory_space<vmem>>, %arg3: memref<1x128xf32, #tpu.memory_space<vmem>>, %arg4: memref<8x128xf32, #tpu.memory_space<vmem>>) attributes {dimension_semantics = [], scalar_prefetch = 0 : i64, scratch_operands = 0 : i64, tpu.core_type = #tpu.core_type<tc>} {
    %c0 = arith.constant 0 : index
    %c0_0 = arith.constant 0 : index
    %c0_1 = arith.constant 0 : index
    %0 = vector.load %arg0[%c0, %c0_0, %c0_1] : memref<2x8x48xbf16, #tpu.memory_space<vmem>>, vector<1x8x48xbf16>
    %1 = vector.shape_cast %0 : vector<1x8x48xbf16> to vector<8x48xbf16>
    %c0_2 = arith.constant 0 : index
    %c0_3 = arith.constant 0 : index
    %c0_4 = arith.constant 0 : index
    %2 = vector.load %arg1[%c0_2, %c0_3, %c0_4] : memref<2x48x1024xbf16, #tpu.memory_space<vmem>>, vector<1x48x1024xbf16>
    %3 = vector.shape_cast %2 : vector<1x48x1024xbf16> to vector<48x1024xbf16>
    %cst = arith.constant dense<0.000000e+00> : vector<8x1024xf32>
    %4 = tpu.matmul %1, %3, %cst {dimension_numbers = #tpu.dot_dimension_numbers<[1], [0], [0], [1], [0, 0, 1, 1], [], []>} : vector<8x48xbf16>, vector<48x1024xbf16>, vector<8x1024xf32> -> vector<8x1024xf32>
    %c1 = arith.constant 1 : index
    %c0_5 = arith.constant 0 : index
    %c0_6 = arith.constant 0 : index
    %5 = vector.load %arg0[%c1, %c0_5, %c0_6] : memref<2x8x48xbf16, #tpu.memory_space<vmem>>, vector<1x8x48xbf16>
    %6 = vector.shape_cast %5 : vector<1x8x48xbf16> to vector<8x48xbf16>
    %c1_7 = arith.constant 1 : index
    %c0_8 = arith.constant 0 : index
    %c0_9 = arith.constant 0 : index
    %7 = vector.load %arg1[%c1_7, %c0_8, %c0_9] : memref<2x48x1024xbf16, #tpu.memory_space<vmem>>, vector<1x48x1024xbf16>
    %8 = vector.shape_cast %7 : vector<1x48x1024xbf16> to vector<48x1024xbf16>
    %cst_10 = arith.constant dense<0.000000e+00> : vector<8x1024xf32>
    %9 = tpu.matmul %6, %8, %cst_10 {dimension_numbers = #tpu.dot_dimension_numbers<[1], [0], [0], [1], [0, 0, 1, 1], [], []>} : vector<8x48xbf16>, vector<48x1024xbf16>, vector<8x1024xf32> -> vector<8x1024xf32>
    %10 = arith.truncf %4 : vector<8x1024xf32> to vector<8x1024xbf16>
    %11 = arith.truncf %9 : vector<8x1024xf32> to vector<8x1024xbf16>
    %12 = tpu.concatenate %10, %11 in 1 : vector<8x1024xbf16>, vector<8x1024xbf16> -> vector<8x2048xbf16>
    %c0_11 = arith.constant 0 : index
    %c0_12 = arith.constant 0 : index
    %13 = vector.load %arg2[%c0_11, %c0_12] : memref<2048x128xbf16, #tpu.memory_space<vmem>>, vector<2048x128xbf16>
    %cst_13 = arith.constant dense<0.000000e+00> : vector<8x128xf32>
    %14 = tpu.matmul %12, %13, %cst_13 {dimension_numbers = #tpu.dot_dimension_numbers<[1], [0], [0], [1], [0, 0, 1, 1], [], []>} : vector<8x2048xbf16>, vector<2048x128xbf16>, vector<8x128xf32> -> vector<8x128xf32>
    %c0_14 = arith.constant 0 : index
    %c0_15 = arith.constant 0 : index
    %15 = vector.load %arg3[%c0_14, %c0_15] : memref<1x128xf32, #tpu.memory_space<vmem>>, vector<1x128xf32>
    %16 = vector.broadcast %15 : vector<1x128xf32> to vector<8x128xf32>
    %17 = arith.addf %14, %16 : vector<8x128xf32>
    %c0_16 = arith.constant 0 : index
    %c0_17 = arith.constant 0 : index
    %18 = vector.load %arg4[%c0_16, %c0_17] : memref<8x128xf32, #tpu.memory_space<vmem>>, vector<8x128xf32>
    tpu.vector_store %arg4[%c0_16, %c0_17], %17 {strides = array<i32>} : memref<8x128xf32, #tpu.memory_space<vmem>>, vector<8x128xf32>,
    return
  }
}

</mosaic_0001>

<llo_original>
// kernel: ensemble_forward.1
$region0: #{ensemble_forward.1}
  #allocation0 [shape = 'u32[]', space=smem, size = 0x4, offset = 0x4, fixed_abs, tag = 'smem constant byte address 0x4 - core index']
  #allocation1 [shape = 'u32[144,128]{1,0:T(1,128)}', space=vmem, size = 0x12000, scoped, tag = 'internal scratch']
  %s0 = inlined_call_operand.vmem [shape: bf16[2,8,48], index: 0, kind: input, shape index: {}]
  %s1 = inlined_call_operand.vmem [shape: bf16[2,48,1024], index: 1, kind: input, shape index: {}]
  %s2 = inlined_call_operand.vmem [shape: bf16[2048,128], index: 2, kind: input, shape index: {}]
  %s3 = inlined_call_operand.vmem [shape: f32[1,128], index: 3, kind: input, shape index: {}]
  %s4 = inlined_call_operand.vmem [shape: f32[8,128], index: 4, kind: output, shape index: {}]
  %s5 = sld [smem:[#allocation0]]
  $region26: #{ensemble_forward.1} parent=0
    _
  %s7 = ssub.s32 1, %s5
  %s8 = scalar_select 0, %s7, %s5
  // Predicated region
  $region2: #{ensemble_forward.1} parent=0 // pred_check
    _
  $region3: #{ensemble_forward.1} parent=0 // pred_check_branch
    %10 = sbr.rel (0) target = $region5
  $region4: #{ensemble_forward.1} parent=0 // pred_region
    _
  $region5: #{ensemble_forward.1} parent=0 // pred_fallthru
    _
  // Predicated region
  $region6: #{ensemble_forward.1} parent=0 // pred_check
    _
  $region7: #{ensemble_forward.1} parent=0 // pred_check_branch
    %12 = sbr.rel (0) target = $region9
  $region8: #{ensemble_forward.1} parent=0 // pred_region
    _
  $region9: #{ensemble_forward.1} parent=0 // pred_fallthru
    _
  // Predicated region
  $region10: #{ensemble_forward.1} parent=0 // pred_check
    _
  $region11: #{ensemble_forward.1} parent=0 // pred_check_branch
    %14 = sbr.rel (0) target = $region13
  $region12: #{ensemble_forward.1} parent=0 // pred_region
    _
  $region13: #{ensemble_forward.1} parent=0 // pred_fallthru
    _
  // Predicated region
  $region14: #{ensemble_forward.1} parent=0 // pred_check
    _
  $region15: #{ensemble_forward.1} parent=0 // pred_check_branch
    %16 = sbr.rel (0) target = $region17
  $region16: #{ensemble_forward.1} parent=0 // pred_region
    _
  $region17: #{ensemble_forward.1} parent=0 // pred_fallthru
    _
  %v18 = vld [vmem:[%s0] sm:$0xf]
  %v19 = vld [vmem:[%s1] sm:$0xff]
  %v20 = vld [vmem:[%s1 + $0x8] sm:$0xff]
  %v21 = vld [vmem:[%s1 + $0x10] sm:$0xff]
  %v22 = vld [vmem:[%s1 + $0x18] sm:$0xff]
  %v23 = vld [vmem:[%s1 + $0x20] sm:$0xff]
  %v24 = vld [vmem:[%s1 + $0x28] sm:$0xff]
  %v25 = vld [vmem:[%s1 + $0x30] sm:$0xff]
  %v26 = vld [vmem:[%s1 + $0x38] sm:$0xff]
  %v27 = vld [vmem:[%s1 + $0x40] sm:$0xff]
  %v28 = vld [vmem:[%s1 + $0x48] sm:$0xff]
  %v29 = vld [vmem:[%s1 + $0x50] sm:$0xff]
  %v30 = vld [vmem:[%s1 + $0x58] sm:$0xff]
  %v31 = vld [vmem:[%s1 + $0x60] sm:$0xff]
  %v32 = vld [vmem:[%s1 + $0x68] sm:$0xff]
  %v33 = vld [vmem:[%s1 + $0x70] sm:$0xff]
  %v34 = vld [vmem:[%s1 + $0x78] sm:$0xff]
  %v35 = vld [vmem:[%s1 + $0x80] sm:$0xff]
  %v36 = vld [vmem:[%s1 + $0x88] sm:$0xff]
  %v37 = vld [vmem:[%s1 + $0x90] sm:$0xff]
  %v38 = vld [vmem:[%s1 + $0x98] sm:$0xff]
  %v39 = vld [vmem:[%s1 + $0xa0] sm:$0xff]
  %v40 = vld [vmem:[%s1 + $0xa8] sm:$0xff]
  %v41 = vld [vmem:[%s1 + $0xb0] sm:$0xff]
  %v42 = vld [vmem:[%s1 + $0xb8] sm:$0xff]
  %v67 = vunpack.c.l.b16 %v19
  %v68 = vunpack.c.h.b16 %v19
  %v69 = vunpack.c.l.b16 %v20
  %v70 = vunpack.c.h.b16 %v20
  %v71 = vunpack.c.l.b16 %v21
  %v72 = vunpack.c.h.b16 %v21
  %v73 = vunpack.c.l.b16 %v22
  %v74 = vunpack.c.h.b16 %v22
  %v75 = vunpack.c.l.b16 %v23
  %v76 = vunpack.c.h.b16 %v23
  %v77 = vunpack.c.l.b16 %v24
  %v78 = vunpack.c.h.b16 %v24
  %v79 = vunpack.c.l.b16 %v25
  %v80 = vunpack.c.h.b16 %v25
  %v81 = vunpack.c.l.b16 %v26
  %v82 = vunpack.c.h.b16 %v26
  %v83 = vunpack.c.l.b16 %v27
  %v84 = vunpack.c.h.b16 %v27
  %v85 = vunpack.c.l.b16 %v28
  %v86 = vunpack.c.h.b16 %v28
  %v87 = vunpack.c.l.b16 %v29
  %v88 = vunpack.c.h.b16 %v29
  %v89 = vunpack.c.l.b16 %v30
  %v90 = vunpack.c.h.b16 %v30
  %v91 = vunpack.c.l.b16 %v31
  %v92 = vunpack.c.h.b16 %v31
  %v93 = vunpack.c.l.b16 %v32
  %v94 = vunpack.c.h.b16 %v32
  %v95 = vunpack.c.l.b16 %v33
  %v96 = vunpack.c.h.b16 %v33
  %v97 = vunpack.c.l.b16 %v34
  %v98 = vunpack.c.h.b16 %v34
  %v99 = vunpack.c.l.b16 %v35
  %v100 = vunpack.c.h.b16 %v35
  %v101 = vunpack.c.l.b16 %v36
  %v102 = vunpack.c.h.b16 %v36
  %v103 = vunpack.c.l.b16 %v37
  %v104 = vunpack.c.h.b16 %v37
  %v105 = vunpack.c.l.b16 %v38
  %v106 = vunpack.c.h.b16 %v38
  %v107 = vunpack.c.l.b16 %v39
  %v108 = vunpack.c.h.b16 %v39
  %v109 = vunpack.c.l.b16 %v40
  %v110 = vunpack.c.h.b16 %v40
  %v111 = vunpack.c.l.b16 %v41
  %v112 = vunpack.c.h.b16 %v41
  %v113 = vunpack.c.l.b16 %v42
  %v114 = vunpack.c.h.b16 %v42
  %v115 = vpack.c.b16 %v75, %v67
  %v116 = vpack.c.b16 %v76, %v68
  %v117 = vpack.c.b16 %v77, %v69
  %v118 = vpack.c.b16 %v78, %v70
  %v119 = vpack.c.b16 %v79, %v71
  %v120 = vpack.c.b16 %v80, %v72
  %v121 = vpack.c.b16 %v81, %v73
  %v122 = vpack.c.b16 %v82, %v74
  %v123 = vpack.c.b16 %v91, %v83
  %v124 = vpack.c.b16 %v92, %v84
  %v125 = vpack.c.b16 %v93, %v85
  %v126 = vpack.c.b16 %v94, %v86
  %v127 = vpack.c.b16 %v95, %v87
  %v128 = vpack.c.b16 %v96, %v88
  %v129 = vpack.c.b16 %v97, %v89
  %v130 = vpack.c.b16 %v98, %v90
  %v131 = vpack.c.b16 %v107, %v99
  %v132 = vpack.c.b16 %v108, %v100
  %v133 = vpack.c.b16 %v109, %v101
  %v134 = vpack.c.b16 %v110, %v102
  %v135 = vpack.c.b16 %v111, %v103
  %v136 = vpack.c.b16 %v112, %v104
  %v137 = vpack.c.b16 %v113, %v105
  %v138 = vpack.c.b16 %v114, %v106
  %vm163 = vcmask 392192
  %v165 = vsel %vm163, %v18, 0
  %167 = vmatprep.subr.bf16.mxu0 %v116
  %168 = vmatpush1.bf16.msra.mxu0 %v115
  %169 = vmatprep.subr.bf16.mxu0 %v124
  %170 = vmatpush1.bf16.msra.mxu0 %v123
  %171 = vmatprep.subr.bf16.mxu0 %v132
  %172 = vmatpush1.bf16.msra.mxu0 %v131
  %173 = vmatprep.subr.bf16.mxu0 0
  %174 = vmatpush1.bf16.msra.mxu0 0
  %175 = vmatprep.subr.bf16.mxu0 0
  %176 = vmatpush1.bf16.msra.mxu0 0
  %177 = vmatprep.subr.bf16.mxu0 0
  %178 = vmatpush1.bf16.msra.mxu0 0
  %179 = vmatprep.subr.bf16.mxu0 0
  %180 = vmatpush1.bf16.msra.mxu0 0
  %181 = vmatprep.subr.bf16.mxu0 0
  %182 = vmatpush1.bf16.msra.mxu0 0
  %183 = vmatprep.subr.bf16.mxu0 0
  %184 = vmatpush1.bf16.msra.mxu0 0
  %185 = vmatprep.subr.bf16.mxu0 0
  %186 = vmatpush1.bf16.msra.mxu0 0
  %187 = vmatprep.subr.bf16.mxu0 0
  %188 = vmatpush1.bf16.msra.mxu0 0
  %189 = vmatprep.subr.bf16.mxu0 0
  %190 = vmatpush1.bf16.msra.mxu0 0
  %191 = vmatprep.subr.bf16.mxu0 0
  %192 = vmatpush1.bf16.msra.mxu0 0
  %193 = vmatprep.subr.bf16.mxu0 0
  %194 = vmatpush1.bf16.msra.mxu0 0
  %195 = vmatprep.subr.bf16.mxu0 0
  %196 = vmatpush1.bf16.msra.mxu0 0
  %197 = vmatprep.subr.bf16.mxu0 0
  %198 = vmatpush1.bf16.msra.mxu0 0
  %199 = vmatprep.mubr.bf16.mxu0 0
  %200 = vmatmul.mubr.bf16.gmra.mrb[0].mxu0 %v165
  %v201 = vpop.f32.mrb[0].mxu0
  %v202 = vadd.f32 0.0, %v201
  %v203 = vpop.f32.mrb[0].mxu0
  %v204 = vadd.f32 0.0, %v203
  %v205 = vpop.f32.mrb[0].mxu0
  %v206 = vpop.f32.mrb[0].mxu0
  %207 = vdwg.mxu0
  %208 = vmatprep.subr.bf16.mxu0 %v118
  %209 = vmatpush1.bf16.msra.mxu0 %v117
  %210 = vmatprep.subr.bf16.mxu0 %v126
  %211 = vmatpush1.bf16.msra.mxu0 %v125
  %212 = vmatprep.subr.bf16.mxu0 %v134
  %213 = vmatpush1.bf16.msra.mxu0 %v133
  %214 = vmatprep.subr.bf16.mxu0 0
  %215 = vmatpush1.bf16.msra.mxu0 0
  %216 = vmatprep.subr.bf16.mxu0 0
  %217 = vmatpush1.bf16.msra.mxu0 0
  %218 = vmatprep.subr.bf16.mxu0 0
  %219 = vmatpush1.bf16.msra.mxu0 0
  %220 = vmatprep.subr.bf16.mxu0 0
  %221 = vmatpush1.bf16.msra.mxu0 0
  %222 = vmatprep.subr.bf16.mxu0 0
  %223 = vmatpush1.bf16.msra.mxu0 0
  %224 = vmatprep.subr.bf16.mxu0 0
  %225 = vmatpush1.bf16.msra.mxu0 0
  %226 = vmatprep.subr.bf16.mxu0 0
  %227 = vmatpush1.bf16.msra.mxu0 0
  %228 = vmatprep.subr.bf16.mxu0 0
  %229 = vmatpush1.bf16.msra.mxu0 0
  %230 = vmatprep.subr.bf16.mxu0 0
  %231 = vmatpush1.bf16.msra.mxu0 0
  %232 = vmatprep.subr.bf16.mxu0 0
  %233 = vmatpush1.bf16.msra.mxu0 0
  %234 = vmatprep.subr.bf16.mxu0 0
  %235 = vmatpush1.bf16.msra.mxu0 0
  %236 = vmatprep.subr.bf16.mxu0 0
  %237 = vmatpush1.bf16.msra.mxu0 0
  %238 = vmatprep.subr.bf16.mxu0 0
  %239 = vmatpush1.bf16.msra.mxu0 0
  %240 = vmatprep.mubr.bf16.mxu0 0
  %241 = vmatmul.mubr.bf16.gmra.mrb[0].mxu0 %v165
  %v242 = vpop.f32.mrb[0].mxu0
  %v243 = vadd.f32 0.0, %v242
  %v244 = vpop.f32.mrb[0].mxu0
  %v245 = vadd.f32 0.0, %v244
  %v246 = vpop.f32.mrb[0].mxu0
  %v247 = vpop.f32.mrb[0].mxu0
  %248 = vdwg.mxu0
  %249 = vmatprep.subr.bf16.mxu0 %v120
  %250 = vmatpush1.bf16.msra.mxu0 %v119
  %251 = vmatprep.subr.bf16.mxu0 %v128
  %252 = vmatpush1.bf16.msra.mxu0 %v127
  %253 = vmatprep.subr.bf16.mxu0 %v136
  %254 = vmatpush1.bf16.msra.mxu0 %v135
  %255 = vmatprep.subr.bf16.mxu0 0
  %256 = vmatpush1.bf16.msra.mxu0 0
  %257 = vmatprep.subr.bf16.mxu0 0
  %258 = vmatpush1.bf16.msra.mxu0 0
  %259 = vmatprep.subr.bf16.mxu0 0
  %260 = vmatpush1.bf16.msra.mxu0 0
  %261 = vmatprep.subr.bf16.mxu0 0
  %262 = vmatpush1.bf16.msra.mxu0 0
  %263 = vmatprep.subr.bf16.mxu0 0
  %264 = vmatpush1.bf16.msra.mxu0 0
  %265 = vmatprep.subr.bf16.mxu0 0
  %266 = vmatpush1.bf16.msra.mxu0 0
  %267 = vmatprep.subr.bf16.mxu0 0
  %268 = vmatpush1.bf16.msra.mxu0 0
  %269 = vmatprep.subr.bf16.mxu0 0
  %270 = vmatpush1.bf16.msra.mxu0 0
  %271 = vmatprep.subr.bf16.mxu0 0
  %272 = vmatpush1.bf16.msra.mxu0 0
  %273 = vmatprep.subr.bf16.mxu0 0
  %274 = vmatpush1.bf16.msra.mxu0 0
  %275 = vmatprep.subr.bf16.mxu0 0
  %276 = vmatpush1.bf16.msra.mxu0 0
  %277 = vmatprep.subr.bf16.mxu0 0
  %278 = vmatpush1.bf16.msra.mxu0 0
  %279 = vmatprep.subr.bf16.mxu0 0
  %280 = vmatpush1.bf16.msra.mxu0 0
  %281 = vmatprep.mubr.bf16.mxu0 0
  %282 = vmatmul.mubr.bf16.gmra.mrb[0].mxu0 %v165
  %v283 = vpop.f32.mrb[0].mxu0
  %v284 = vadd.f32 0.0, %v283
  %v285 = vpop.f32.mrb[0].mxu0
  %v286 = vadd.f32 0.0, %v285
  %v287 = vpop.f32.mrb[0].mxu0
  %v288 = vpop.f32.mrb[0].mxu0
  %289 = vdwg.mxu0
  %290 = vmatprep.subr.bf16.mxu0 %v122
  %291 = vmatpush1.bf16.msra.mxu0 %v121
  %292 = vmatprep.subr.bf16.mxu0 %v130
  %293 = vmatpush1.bf16.msra.mxu0 %v129
  %294 = vmatprep.subr.bf16.mxu0 %v138
  %295 = vmatpush1.bf16.msra.mxu0 %v137
  %296 = vmatprep.subr.bf16.mxu0 0
  %297 = vmatpush1.bf16.msra.mxu0 0
  %298 = vmatprep.subr.bf16.mxu0 0
  %299 = vmatpush1.bf16.msra.mxu0 0
  %300 = vmatprep.subr.bf16.mxu0 0
  %301 = vmatpush1.bf16.msra.mxu0 0
  %302 = vmatprep.subr.bf16.mxu0 0
  %303 = vmatpush1.bf16.msra.mxu0 0
  %304 = vmatprep.subr.bf16.mxu0 0
  %305 = vmatpush1.bf16.msra.mxu0 0
  %306 = vmatprep.subr.bf16.mxu0 0
  %307 = vmatpush1.bf16.msra.mxu0 0
  %308 = vmatprep.subr.bf16.mxu0 0
  %309 = vmatpush1.bf16.msra.mxu0 0
  %310 = vmatprep.subr.bf16.mxu0 0
  %311 = vmatpush1.bf16.msra.mxu0 0
  %312 = vmatprep.subr.bf16.mxu0 0
  %313 = vmatpush1.bf16.msra.mxu0 0
  %314 = vmatprep.subr.bf16.mxu0 0
  %315 = vmatpush1.bf16.msra.mxu0 0
  %316 = vmatprep.subr.bf16.mxu0 0
  %317 = vmatpush1.bf16.msra.mxu0 0
  %318 = vmatprep.subr.bf16.mxu0 0
  %319 = vmatpush1.bf16.msra.mxu0 0
  %320 = vmatprep.subr.bf16.mxu0 0
  %321 = vmatpush1.bf16.msra.mxu0 0
  %322 = vmatprep.mubr.bf16.mxu0 0
  %323 = vmatmul.mubr.bf16.gmra.mrb[0].mxu0 %v165
  %v324 = vpop.f32.mrb[0].mxu0
  %v325 = vadd.f32 0.0, %v324
  %v326 = vpop.f32.mrb[0].mxu0
  %v327 = vadd.f32 0.0, %v326
  %v328 = vpop.f32.mrb[0].mxu0
  %v329 = vpop.f32.mrb[0].mxu0
  %330 = vdwg.mxu0
  %s331 = scalar_lea.vmem %s0, 4
  %v332 = vld [vmem:[%s331] sm:$0xf]
  %s333 = scalar_lea.vmem %s1, 192
  %v334 = vld [vmem:[%s333] sm:$0xff]
  %v335 = vld [vmem:[%s333 + $0x8] sm:$0xff]
  %v336 = vld [vmem:[%s333 + $0x10] sm:$0xff]
  %v337 = vld [vmem:[%s333 + $0x18] sm:$0xff]
  %v338 = vld [vmem:[%s333 + $0x20] sm:$0xff]
  %v339 = vld [vmem:[%s333 + $0x28] sm:$0xff]
  %v340 = vld [vmem:[%s333 + $0x30] sm:$0xff]
  %v341 = vld [vmem:[%s333 + $0x38] sm:$0xff]
  %v342 = vld [vmem:[%s333 + $0x40] sm:$0xff]
  %v343 = vld [vmem:[%s333 + $0x48] sm:$0xff]
  %v344 = vld [vmem:[%s333 + $0x50] sm:$0xff]
  %v345 = vld [vmem:[%s333 + $0x58] sm:$0xff]
  %v346 = vld [vmem:[%s333 + $0x60] sm:$0xff]
  %v347 = vld [vmem:[%s333 + $0x68] sm:$0xff]
  %v348 = vld [vmem:[%s333 + $0x70] sm:$0xff]
  %v349 = vld [vmem:[%s333 + $0x78] sm:$0xff]
  %v350 = vld [vmem:[%s333 + $0x80] sm:$0xff]
  %v351 = vld [vmem:[%s333 + $0x88] sm:$0xff]
  %v352 = vld [vmem:[%s333 + $0x90] sm:$0xff]
  %v353 = vld [vmem:[%s333 + $0x98] sm:$0xff]
  %v354 = vld [vmem:[%s333 + $0xa0] sm:$0xff]
  %v355 = vld [vmem:[%s333 + $0xa8] sm:$0xff]
  %v356 = vld [vmem:[%s333 + $0xb0] sm:$0xff]
  %v357 = vld [vmem:[%s333 + $0xb8] sm:$0xff]
  %v382 = vunpack.c.l.b16 %v334
  %v383 = vunpack.c.h.b16 %v334
  %v384 = vunpack.c.l.b16 %v335
  %v385 = vunpack.c.h.b16 %v335
  %v386 = vunpack.c.l.b16 %v336
  %v387 = vunpack.c.h.b16 %v336
  %v388 = vunpack.c.l.b16 %v337
  %v389 = vunpack.c.h.b16 %v337
  %v390 = vunpack.c.l.b16 %v338
  %v391 = vunpack.c.h.b16 %v338
  %v392 = vunpack.c.l.b16 %v339
  %v393 = vunpack.c.h.b16 %v339
  %v394 = vunpack.c.l.b16 %v340
  %v395 = vunpack.c.h.b16 %v340
  %v396 = vunpack.c.l.b16 %v341
  %v397 = vunpack.c.h.b16 %v341
  %v398 = vunpack.c.l.b16 %v342
  %v399 = vunpack.c.h.b16 %v342
  %v400 = vunpack.c.l.b16 %v343
  %v401 = vunpack.c.h.b16 %v343
  %v402 = vunpack.c.l.b16 %v344
  %v403 = vunpack.c.h.b16 %v344
  %v404 = vunpack.c.l.b16 %v345
  %v405 = vunpack.c.h.b16 %v345
  %v406 = vunpack.c.l.b16 %v346
  %v407 = vunpack.c.h.b16 %v346
  %v408 = vunpack.c.l.b16 %v347
  %v409 = vunpack.c.h.b16 %v347
  %v410 = vunpack.c.l.b16 %v348
  %v411 = vunpack.c.h.b16 %v348
  %v412 = vunpack.c.l.b16 %v349
  %v413 = vunpack.c.h.b16 %v349
  %v414 = vunpack.c.l.b16 %v350
  %v415 = vunpack.c.h.b16 %v350
  %v416 = vunpack.c.l.b16 %v351
  %v417 = vunpack.c.h.b16 %v351
  %v418 = vunpack.c.l.b16 %v352
  %v419 = vunpack.c.h.b16 %v352
  %v420 = vunpack.c.l.b16 %v353
  %v421 = vunpack.c.h.b16 %v353
  %v422 = vunpack.c.l.b16 %v354
  %v423 = vunpack.c.h.b16 %v354
  %v424 = vunpack.c.l.b16 %v355
  %v425 = vunpack.c.h.b16 %v355
  %v426 = vunpack.c.l.b16 %v356
  %v427 = vunpack.c.h.b16 %v356
  %v428 = vunpack.c.l.b16 %v357
  %v429 = vunpack.c.h.b16 %v357
  %v430 = vpack.c.b16 %v390, %v382
  %v431 = vpack.c.b16 %v391, %v383
  %v432 = vpack.c.b16 %v392, %v384
  %v433 = vpack.c.b16 %v393, %v385
  %v434 = vpack.c.b16 %v394, %v386
  %v435 = vpack.c.b16 %v395, %v387
  %v436 = vpack.c.b16 %v396, %v388
  %v437 = vpack.c.b16 %v397, %v389
  %v438 = vpack.c.b16 %v406, %v398
  %v439 = vpack.c.b16 %v407, %v399
  %v440 = vpack.c.b16 %v408, %v400
  %v441 = vpack.c.b16 %v409, %v401
  %v442 = vpack.c.b16 %v410, %v402
  %v443 = vpack.c.b16 %v411, %v403
  %v444 = vpack.c.b16 %v412, %v404
  %v445 = vpack.c.b16 %v413, %v405
  %v446 = vpack.c.b16 %v422, %v414
  %v447 = vpack.c.b16 %v423, %v415
  %v448 = vpack.c.b16 %v424, %v416
  %v449 = vpack.c.b16 %v425, %v417
  %v450 = vpack.c.b16 %v426, %v418
  %v451 = vpack.c.b16 %v427, %v419
  %v452 = vpack.c.b16 %v428, %v420
  %v453 = vpack.c.b16 %v429, %v421
  %v479 = vsel %vm163, %v332, 0
  %481 = vmatprep.subr.bf16.mxu0 %v431
  %482 = vmatpush1.bf16.msra.mxu0 %v430
  %483 = vmatprep.subr.bf16.mxu0 %v439
  %484 = vmatpush1.bf16.msra.mxu0 %v438
  %485 = vmatprep.subr.bf16.mxu0 %v447
  %486 = vmatpush1.bf16.msra.mxu0 %v446
  %487 = vmatprep.subr.bf16.mxu0 0
  %488 = vmatpush1.bf16.msra.mxu0 0
  %489 = vmatprep.subr.bf16.mxu0 0
  %490 = vmatpush1.bf16.msra.mxu0 0
  %491 = vmatprep.subr.bf16.mxu0 0
  %492 = vmatpush1.bf16.msra.mxu0 0
  %493 = vmatprep.subr.bf16.mxu0 0
  %494 = vmatpush1.bf16.msra.mxu0 0
  %495 = vmatprep.subr.bf16.mxu0 0
  %496 = vmatpush1.bf16.msra.mxu0 0
  %497 = vmatprep.subr.bf16.mxu0 0
  %498 = vmatpush1.bf16.msra.mxu0 0
  %499 = vmatprep.subr.bf16.mxu0 0
  %500 = vmatpush1.bf16.msra.mxu0 0
  %501 = vmatprep.subr.bf16.mxu0 0
  %502 = vmatpush1.bf16.msra.mxu0 0
  %503 = vmatprep.subr.bf16.mxu0 0
  %504 = vmatpush1.bf16.msra.mxu0 0
  %505 = vmatprep.subr.bf16.mxu0 0
  %506 = vmatpush1.bf16.msra.mxu0 0
  %507 = vmatprep.subr.bf16.mxu0 0
  %508 = vmatpush1.bf16.msra.mxu0 0
  %509 = vmatprep.subr.bf16.mxu0 0
  %510 = vmatpush1.bf16.msra.mxu0 0
  %511 = vmatprep.subr.bf16.mxu0 0
  %512 = vmatpush1.bf16.msra.mxu0 0
  %513 = vmatprep.mubr.bf16.mxu0 0
  %514 = vmatmul.mubr.bf16.gmra.mrb[0].mxu0 %v479
  %v515 = vpop.f32.mrb[0].mxu0
  %v516 = vadd.f32 0.0, %v515
  %v517 = vpop.f32.mrb[0].mxu0
  %v518 = vadd.f32 0.0, %v517
  %v519 = vpop.f32.mrb[0].mxu0
  %v520 = vpop.f32.mrb[0].mxu0
  %521 = vdwg.mxu0
  %522 = vmatprep.subr.bf16.mxu0 %v433
  %523 = vmatpush1.bf16.msra.mxu0 %v432
  %524 = vmatprep.subr.bf16.mxu0 %v441
  %525 = vmatpush1.bf16.msra.mxu0 %v440
  %526 = vmatprep.subr.bf16.mxu0 %v449
  %527 = vmatpush1.bf16.msra.mxu0 %v448
  %528 = vmatprep.subr.bf16.mxu0 0
  %529 = vmatpush1.bf16.msra.mxu0 0
  %530 = vmatprep.subr.bf16.mxu0 0
  %531 = vmatpush1.bf16.msra.mxu0 0
  %532 = vmatprep.subr.bf16.mxu0 0
  %533 = vmatpush1.bf16.msra.mxu0 0
  %534 = vmatprep.subr.bf16.mxu0 0
  %535 = vmatpush1.bf16.msra.mxu0 0
  %536 = vmatprep.subr.bf16.mxu0 0
  %537 = vmatpush1.bf16.msra.mxu0 0
  %538 = vmatprep.subr.bf16.mxu0 0
  %539 = vmatpush1.bf16.msra.mxu0 0
  %540 = vmatprep.subr.bf16.mxu0 0
  %541 = vmatpush1.bf16.msra.mxu0 0
  %542 = vmatprep.subr.bf16.mxu0 0
  %543 = vmatpush1.bf16.msra.mxu0 0
  %544 = vmatprep.subr.bf16.mxu0 0
  %545 = vmatpush1.bf16.msra.mxu0 0
  %546 = vmatprep.subr.bf16.mxu0 0
  %547 = vmatpush1.bf16.msra.mxu0 0
  %548 = vmatprep.subr.bf16.mxu0 0
  %549 = vmatpush1.bf16.msra.mxu0 0
  %550 = vmatprep.subr.bf16.mxu0 0
  %551 = vmatpush1.bf16.msra.mxu0 0
  %552 = vmatprep.subr.bf16.mxu0 0
  %553 = vmatpush1.bf16.msra.mxu0 0
  %554 = vmatprep.mubr.bf16.mxu0 0
  %555 = vmatmul.mubr.bf16.gmra.mrb[0].mxu0 %v479
  %v556 = vpop.f32.mrb[0].mxu0
  %v557 = vadd.f32 0.0, %v556
  %v558 = vpop.f32.mrb[0].mxu0
  %v559 = vadd.f32 0.0, %v558
  %v560 = vpop.f32.mrb[0].mxu0
  %v561 = vpop.f32.mrb[0].mxu0
  %562 = vdwg.mxu0
  %563 = vmatprep.subr.bf16.mxu0 %v435
  %564 = vmatpush1.bf16.msra.mxu0 %v434
  %565 = vmatprep.subr.bf16.mxu0 %v443
  %566 = vmatpush1.bf16.msra.mxu0 %v442
  %567 = vmatprep.subr.bf16.mxu0 %v451
  %568 = vmatpush1.bf16.msra.mxu0 %v450
  %569 = vmatprep.subr.bf16.mxu0 0
  %570 = vmatpush1.bf16.msra.mxu0 0
  %571 = vmatprep.subr.bf16.mxu0 0
  %572 = vmatpush1.bf16.msra.mxu0 0
  %573 = vmatprep.subr.bf16.mxu0 0
  %574 = vmatpush1.bf16.msra.mxu0 0
  %575 = vmatprep.subr.bf16.mxu0 0
  %576 = vmatpush1.bf16.msra.mxu0 0
  %577 = vmatprep.subr.bf16.mxu0 0
  %578 = vmatpush1.bf16.msra.mxu0 0
  %579 = vmatprep.subr.bf16.mxu0 0
  %580 = vmatpush1.bf16.msra.mxu0 0
  %581 = vmatprep.subr.bf16.mxu0 0
  %582 = vmatpush1.bf16.msra.mxu0 0
  %583 = vmatprep.subr.bf16.mxu0 0
  %584 = vmatpush1.bf16.msra.mxu0 0
  %585 = vmatprep.subr.bf16.mxu0 0
  %586 = vmatpush1.bf16.msra.mxu0 0
  %587 = vmatprep.subr.bf16.mxu0 0
  %588 = vmatpush1.bf16.msra.mxu0 0
  %589 = vmatprep.subr.bf16.mxu0 0
  %590 = vmatpush1.bf16.msra.mxu0 0
  %591 = vmatprep.subr.bf16.mxu0 0
  %592 = vmatpush1.bf16.msra.mxu0 0
  %593 = vmatprep.subr.bf16.mxu0 0
  %594 = vmatpush1.bf16.msra.mxu0 0
  %595 = vmatprep.mubr.bf16.mxu0 0
  %596 = vmatmul.mubr.bf16.gmra.mrb[0].mxu0 %v479
  %v597 = vpop.f32.mrb[0].mxu0
  %v598 = vadd.f32 0.0, %v597
  %v599 = vpop.f32.mrb[0].mxu0
  %v600 = vadd.f32 0.0, %v599
  %v601 = vpop.f32.mrb[0].mxu0
  %v602 = vpop.f32.mrb[0].mxu0
  %603 = vdwg.mxu0
  %604 = vmatprep.subr.bf16.mxu0 %v437
  %605 = vmatpush1.bf16.msra.mxu0 %v436
  %606 = vmatprep.subr.bf16.mxu0 %v445
  %607 = vmatpush1.bf16.msra.mxu0 %v444
  %608 = vmatprep.subr.bf16.mxu0 %v453
  %609 = vmatpush1.bf16.msra.mxu0 %v452
  %610 = vmatprep.subr.bf16.mxu0 0
  %611 = vmatpush1.bf16.msra.mxu0 0
  %612 = vmatprep.subr.bf16.mxu0 0
  %613 = vmatpush1.bf16.msra.mxu0 0
  %614 = vmatprep.subr.bf16.mxu0 0
  %615 = vmatpush1.bf16.msra.mxu0 0
  %616 = vmatprep.subr.bf16.mxu0 0
  %617 = vmatpush1.bf16.msra.mxu0 0
  %618 = vmatprep.subr.bf16.mxu0 0
  %619 = vmatpush1.bf16.msra.mxu0 0
  %620 = vmatprep.subr.bf16.mxu0 0
  %621 = vmatpush1.bf16.msra.mxu0 0
  %622 = vmatprep.subr.bf16.mxu0 0
  %623 = vmatpush1.bf16.msra.mxu0 0
  %624 = vmatprep.subr.bf16.mxu0 0
  %625 = vmatpush1.bf16.msra.mxu0 0
  %626 = vmatprep.subr.bf16.mxu0 0
  %627 = vmatpush1.bf16.msra.mxu0 0
  %628 = vmatprep.subr.bf16.mxu0 0
  %629 = vmatpush1.bf16.msra.mxu0 0
  %630 = vmatprep.subr.bf16.mxu0 0
  %631 = vmatpush1.bf16.msra.mxu0 0
  %632 = vmatprep.subr.bf16.mxu0 0
  %633 = vmatpush1.bf16.msra.mxu0 0
  %634 = vmatprep.subr.bf16.mxu0 0
  %635 = vmatpush1.bf16.msra.mxu0 0
  %636 = vmatprep.mubr.bf16.mxu0 0
  %637 = vmatmul.mubr.bf16.gmra.mrb[0].mxu0 %v479
  %v638 = vpop.f32.mrb[0].mxu0
  %v639 = vadd.f32 0.0, %v638
  %v640 = vpop.f32.mrb[0].mxu0
  %v641 = vadd.f32 0.0, %v640
  %v642 = vpop.f32.mrb[0].mxu0
  %v643 = vpop.f32.mrb[0].mxu0
  %644 = vdwg.mxu0
  %v645 = vpack.c.bf16 %v202, %v202
  %v646 = vpack.c.bf16 %v204, %v204
  %v647 = vpack.c.bf16 %v243, %v243
  %v648 = vpack.c.bf16 %v245, %v245
  %v649 = vpack.c.bf16 %v284, %v284
  %v650 = vpack.c.bf16 %v286, %v286
  %v651 = vpack.c.bf16 %v325, %v325
  %v652 = vpack.c.bf16 %v327, %v327
  %v653 = vpack.c.bf16 %v516, %v516
  %v654 = vpack.c.bf16 %v518, %v518
  %v655 = vpack.c.bf16 %v557, %v557
  %v656 = vpack.c.bf16 %v559, %v559
  %v657 = vpack.c.bf16 %v598, %v598
  %v658 = vpack.c.bf16 %v600, %v600
  %v659 = vpack.c.bf16 %v639, %v639
  %v660 = vpack.c.bf16 %v641, %v641
  %v661 = vld [vmem:[%s2] sm:$0xf]
  %v662 = vld [vmem:[%s2 + $0x4] sm:$0xf]
  %v663 = vld [vmem:[%s2 + $0x8] sm:$0xf]
  %v664 = vld [vmem:[%s2 + $0xc] sm:$0xf]
  %v665 = vld [vmem:[%s2 + $0x10] sm:$0xf]
  %v666 = vld [vmem:[%s2 + $0x14] sm:$0xf]
  %v667 = vld [vmem:[%s2 + $0x18] sm:$0xf]
  %v668 = vld [vmem:[%s2 + $0x1c] sm:$0xf]
  %v669 = vld [vmem:[%s2 + $0x20] sm:$0xf]
  %v670 = vld [vmem:[%s2 + $0x24] sm:$0xf]
  %v671 = vld [vmem:[%s2 + $0x28] sm:$0xf]
  %v672 = vld [vmem:[%s2 + $0x2c] sm:$0xf]
  %v673 = vld [vmem:[%s2 + $0x30] sm:$0xf]
  %v674 = vld [vmem:[%s2 + $0x34] sm:$0xf]
  %v675 = vld [vmem:[%s2 + $0x38] sm:$0xf]
  %v676 = vld [vmem:[%s2 + $0x3c] sm:$0xf]
  %v677 = vld [vmem:[%s2 + $0x40] sm:$0xf]
  %v678 = vld [vmem:[%s2 + $0x44] sm:$0xf]
  %v679 = vld [vmem:[%s2 + $0x48] sm:$0xf]
  %v680 = vld [vmem:[%s2 + $0x4c] sm:$0xf]
  %v681 = vld [vmem:[%s2 + $0x50] sm:$0xf]
  %v682 = vld [vmem:[%s2 + $0x54] sm:$0xf]
  %v683 = vld [vmem:[%s2 + $0x58] sm:$0xf]
  %v684 = vld [vmem:[%s2 + $0x5c] sm:$0xf]
  %v685 = vld [vmem:[%s2 + $0x60] sm:$0xf]
  %v686 = vld [vmem:[%s2 + $0x64] sm:$0xf]
  %v687 = vld [vmem:[%s2 + $0x68] sm:$0xf]
  %v688 = vld [vmem:[%s2 + $0x6c] sm:$0xf]
  %v689 = vld [vmem:[%s2 + $0x70] sm:$0xf]
  %v690 = vld [vmem:[%s2 + $0x74] sm:$0xf]
  %v691 = vld [vmem:[%s2 + $0x78] sm:$0xf]
  %v692 = vld [vmem:[%s2 + $0x7c] sm:$0xf]
  %v693 = vld [vmem:[%s2 + $0x80] sm:$0xf]
  %v694 = vld [vmem:[%s2 + $0x84] sm:$0xf]
  %v695 = vld [vmem:[%s2 + $0x88] sm:$0xf]
  %v696 = vld [vmem:[%s2 + $0x8c] sm:$0xf]
  %v697 = vld [vmem:[%s2 + $0x90] sm:$0xf]
  %v698 = vld [vmem:[%s2 + $0x94] sm:$0xf]
  %v699 = vld [vmem:[%s2 + $0x98] sm:$0xf]
  %v700 = vld [vmem:[%s2 + $0x9c] sm:$0xf]
  %v701 = vld [vmem:[%s2 + $0xa0] sm:$0xf]
  %v702 = vld [vmem:[%s2 + $0xa4] sm:$0xf]
  %v703 = vld [vmem:[%s2 + $0xa8] sm:$0xf]
  %v704 = vld [vmem:[%s2 + $0xac] sm:$0xf]
  %v705 = vld [vmem:[%s2 + $0xb0] sm:$0xf]
  %v706 = vld [vmem:[%s2 + $0xb4] sm:$0xf]
  %v707 = vld [vmem:[%s2 + $0xb8] sm:$0xf]
  %v708 = vld [vmem:[%s2 + $0xbc] sm:$0xf]
  %v709 = vld [vmem:[%s2 + $0xc0] sm:$0xf]
  %v710 = vld [vmem:[%s2 + $0xc4] sm:$0xf]
  %v711 = vld [vmem:[%s2 + $0xc8] sm:$0xf]
  %v712 = vld [vmem:[%s2 + $0xcc] sm:$0xf]
  %v713 = vld [vmem:[%s2 + $0xd0] sm:$0xf]
  %v714 = vld [vmem:[%s2 + $0xd4] sm:$0xf]
  %v715 = vld [vmem:[%s2 + $0xd8] sm:$0xf]
  %v716 = vld [vmem:[%s2 + $0xdc] sm:$0xf]
  %v717 = vld [vmem:[%s2 + $0xe0] sm:$0xf]
  %v718 = vld [vmem:[%s2 + $0xe4] sm:$0xf]
  %v719 = vld [vmem:[%s2 + $0xe8] sm:$0xf]
  %v720 = vld [vmem:[%s2 + $0xec] sm:$0xf]
  %v721 = vld [vmem:[%s2 + $0xf0] sm:$0xf]
  %v722 = vld [vmem:[%s2 + $0xf4] sm:$0xf]
  %v723 = vld [vmem:[%s2 + $0xf8] sm:$0xf]
  %v724 = vld [vmem:[%s2 + $0xfc] sm:$0xf]
  %v725 = vld [vmem:[%s2 + $0x100] sm:$0xf]
  %v726 = vld [vmem:[%s2 + $0x104] sm:$0xf]
  %v727 = vld [vmem:[%s2 + $0x108] sm:$0xf]
  %v728 = vld [vmem:[%s2 + $0x10c] sm:$0xf]
  %v729 = vld [vmem:[%s2 + $0x110] sm:$0xf]
  %v730 = vld [vmem:[%s2 + $0x114] sm:$0xf]
  %v731 = vld [vmem:[%s2 + $0x118] sm:$0xf]
  %v732 = vld [vmem:[%s2 + $0x11c] sm:$0xf]
  %v733 = vld [vmem:[%s2 + $0x120] sm:$0xf]
  %v734 = vld [vmem:[%s2 + $0x124] sm:$0xf]
  %v735 = vld [vmem:[%s2 + $0x128] sm:$0xf]
  %v736 = vld [vmem:[%s2 + $0x12c] sm:$0xf]
  %v737 = vld [vmem:[%s2 + $0x130] sm:$0xf]
  %v738 = vld [vmem:[%s2 + $0x134] sm:$0xf]
  %v739 = vld [vmem:[%s2 + $0x138] sm:$0xf]
  %v740 = vld [vmem:[%s2 + $0x13c] sm:$0xf]
  %v741 = vld [vmem:[%s2 + $0x140] sm:$0xf]
  %v742 = vld [vmem:[%s2 + $0x144] sm:$0xf]
  %v743 = vld [vmem:[%s2 + $0x148] sm:$0xf]
  %v744 = vld [vmem:[%s2 + $0x14c] sm:$0xf]
  %v745 = vld [vmem:[%s2 + $0x150] sm:$0xf]
  %v746 = vld [vmem:[%s2 + $0x154] sm:$0xf]
  %v747 = vld [vmem:[%s2 + $0x158] sm:$0xf]
  %v748 = vld [vmem:[%s2 + $0x15c] sm:$0xf]
  %v749 = vld [vmem:[%s2 + $0x160] sm:$0xf]
  %v750 = vld [vmem:[%s2 + $0x164] sm:$0xf]
  %v751 = vld [vmem:[%s2 + $0x168] sm:$0xf]
  %v752 = vld [vmem:[%s2 + $0x16c] sm:$0xf]
  %v753 = vld [vmem:[%s2 + $0x170] sm:$0xf]
  %v754 = vld [vmem:[%s2 + $0x174] sm:$0xf]
  %v755 = vld [vmem:[%s2 + $0x178] sm:$0xf]
  %v756 = vld [vmem:[%s2 + $0x17c] sm:$0xf]
  %v757 = vld [vmem:[%s2 + $0x180] sm:$0xf]
  %v758 = vld [vmem:[%s2 + $0x184] sm:$0xf]
  %v759 = vld [vmem:[%s2 + $0x188] sm:$0xf]
  %v760 = vld [vmem:[%s2 + $0x18c] sm:$0xf]
  %v761 = vld [vmem:[%s2 + $0x190] sm:$0xf]
  %v762 = vld [vmem:[%s2 + $0x194] sm:$0xf]
  %v763 = vld [vmem:[%s2 + $0x198] sm:$0xf]
  %v764 = vld [vmem:[%s2 + $0x19c] sm:$0xf]
  %v765 = vld [vmem:[%s2 + $0x1a0] sm:$0xf]
  %v766 = vld [vmem:[%s2 + $0x1a4] sm:$0xf]
  %v767 = vld [vmem:[%s2 + $0x1a8] sm:$0xf]
  %v768 = vld [vmem:[%s2 + $0x1ac] sm:$0xf]
  %v769 = vld [vmem:[%s2 + $0x1b0] sm:$0xf]
  %v770 = vld [vmem:[%s2 + $0x1b4] sm:$0xf]
  %v771 = vld [vmem:[%s2 + $0x1b8] sm:$0xf]
  %v772 = vld [vmem:[%s2 + $0x1bc] sm:$0xf]
  %v773 = vld [vmem:[%s2 + $0x1c0] sm:$0xf]
  %v774 = vld [vmem:[%s2 + $0x1c4] sm:$0xf]
  %v775 = vld [vmem:[%s2 + $0x1c8] sm:$0xf]
  %v776 = vld [vmem:[%s2 + $0x1cc] sm:$0xf]
  %v777 = vld [vmem:[%s2 + $0x1d0] sm:$0xf]
  %v778 = vld [vmem:[%s2 + $0x1d4] sm:$0xf]
  %v779 = vld [vmem:[%s2 + $0x1d8] sm:$0xf]
  %v780 = vld [vmem:[%s2 + $0x1dc] sm:$0xf]
  %v781 = vld [vmem:[%s2 + $0x1e0] sm:$0xf]
  %v782 = vld [vmem:[%s2 + $0x1e4] sm:$0xf]
  %v783 = vld [vmem:[%s2 + $0x1e8] sm:$0xf]
  %v784 = vld [vmem:[%s2 + $0x1ec] sm:$0xf]
  %v785 = vld [vmem:[%s2 + $0x1f0] sm:$0xf]
  %v786 = vld [vmem:[%s2 + $0x1f4] sm:$0xf]
  %v787 = vld [vmem:[%s2 + $0x1f8] sm:$0xf]
  %v788 = vld [vmem:[%s2 + $0x1fc] sm:$0xf]
  %v789 = vld [vmem:[%s2 + $0x200] sm:$0xf]
  %v790 = vld [vmem:[%s2 + $0x204] sm:$0xf]
  %v791 = vld [vmem:[%s2 + $0x208] sm:$0xf]
  %v792 = vld [vmem:[%s2 + $0x20c] sm:$0xf]
  %v793 = vld [vmem:[%s2 + $0x210] sm:$0xf]
  %v794 = vld [vmem:[%s2 + $0x214] sm:$0xf]
  %v795 = vld [vmem:[%s2 + $0x218] sm:$0xf]
  %v796 = vld [vmem:[%s2 + $0x21c] sm:$0xf]
  %v797 = vld [vmem:[%s2 + $0x220] sm:$0xf]
  %v798 = vld [vmem:[%s2 + $0x224] sm:$0xf]
  %v799 = vld [vmem:[%s2 + $0x228] sm:$0xf]
  %v800 = vld [vmem:[%s2 + $0x22c] sm:$0xf]
  %v801 = vld [vmem:[%s2 + $0x230] sm:$0xf]
  %v802 = vld [vmem:[%s2 + $0x234] sm:$0xf]
  %v803 = vld [vmem:[%s2 + $0x238] sm:$0xf]
  %v804 = vld [vmem:[%s2 + $0x23c] sm:$0xf]
  %v805 = vld [vmem:[%s2 + $0x240] sm:$0xf]
  %v806 = vld [vmem:[%s2 + $0x244] sm:$0xf]
  %v807 = vld [vmem:[%s2 + $0x248] sm:$0xf]
  %v808 = vld [vmem:[%s2 + $0x24c] sm:$0xf]
  %v809 = vld [vmem:[%s2 + $0x250] sm:$0xf]
  %v810 = vld [vmem:[%s2 + $0x254] sm:$0xf]
  %v811 = vld [vmem:[%s2 + $0x258] sm:$0xf]
  %v812 = vld [vmem:[%s2 + $0x25c] sm:$0xf]
  %v813 = vld [vmem:[%s2 + $0x260] sm:$0xf]
  %v814 = vld [vmem:[%s2 + $0x264] sm:$0xf]
  %v815 = vld [vmem:[%s2 + $0x268] sm:$0xf]
  %v816 = vld [vmem:[%s2 + $0x26c] sm:$0xf]
  %v817 = vld [vmem:[%s2 + $0x270] sm:$0xf]
  %v818 = vld [vmem:[%s2 + $0x274] sm:$0xf]
  %v819 = vld [vmem:[%s2 + $0x278] sm:$0xf]
  %v820 = vld [vmem:[%s2 + $0x27c] sm:$0xf]
  %v821 = vld [vmem:[%s2 + $0x280] sm:$0xf]
  %v822 = vld [vmem:[%s2 + $0x284] sm:$0xf]
  %v823 = vld [vmem:[%s2 + $0x288] sm:$0xf]
  %v824 = vld [vmem:[%s2 + $0x28c] sm:$0xf]
  %v825 = vld [vmem:[%s2 + $0x290] sm:$0xf]
  %v826 = vld [vmem:[%s2 + $0x294] sm:$0xf]
  %v827 = vld [vmem:[%s2 + $0x298] sm:$0xf]
  %v828 = vld [vmem:[%s2 + $0x29c] sm:$0xf]
  %v829 = vld [vmem:[%s2 + $0x2a0] sm:$0xf]
  %v830 = vld [vmem:[%s2 + $0x2a4] sm:$0xf]
  %v831 = vld [vmem:[%s2 + $0x2a8] sm:$0xf]
  %v832 = vld [vmem:[%s2 + $0x2ac] sm:$0xf]
  %v833 = vld [vmem:[%s2 + $0x2b0] sm:$0xf]
  %v834 = vld [vmem:[%s2 + $0x2b4] sm:$0xf]
  %v835 = vld [vmem:[%s2 + $0x2b8] sm:$0xf]
  %v836 = vld [vmem:[%s2 + $0x2bc] sm:$0xf]
  %v837 = vld [vmem:[%s2 + $0x2c0] sm:$0xf]
  %v838 = vld [vmem:[%s2 + $0x2c4] sm:$0xf]
  %v839 = vld [vmem:[%s2 + $0x2c8] sm:$0xf]
  %v840 = vld [vmem:[%s2 + $0x2cc] sm:$0xf]
  %v841 = vld [vmem:[%s2 + $0x2d0] sm:$0xf]
  %v842 = vld [vmem:[%s2 + $0x2d4] sm:$0xf]
  %v843 = vld [vmem:[%s2 + $0x2d8] sm:$0xf]
  %v844 = vld [vmem:[%s2 + $0x2dc] sm:$0xf]
  %v845 = vld [vmem:[%s2 + $0x2e0] sm:$0xf]
  %v846 = vld [vmem:[%s2 + $0x2e4] sm:$0xf]
  %v847 = vld [vmem:[%s2 + $0x2e8] sm:$0xf]
  %v848 = vld [vmem:[%s2 + $0x2ec] sm:$0xf]
  %v849 = vld [vmem:[%s2 + $0x2f0] sm:$0xf]
  %v850 = vld [vmem:[%s2 + $0x2f4] sm:$0xf]
  %v851 = vld [vmem:[%s2 + $0x2f8] sm:$0xf]
  %v852 = vld [vmem:[%s2 + $0x2fc] sm:$0xf]
  %v853 = vld [vmem:[%s2 + $0x300] sm:$0xf]
  %v854 = vld [vmem:[%s2 + $0x304] sm:$0xf]
  %v855 = vld [vmem:[%s2 + $0x308] sm:$0xf]
  %v856 = vld [vmem:[%s2 + $0x30c] sm:$0xf]
  %v857 = vld [vmem:[%s2 + $0x310] sm:$0xf]
  %v858 = vld [vmem:[%s2 + $0x314] sm:$0xf]
  %v859 = vld [vmem:[%s2 + $0x318] sm:$0xf]
  %v860 = vld [vmem:[%s2 + $0x31c] sm:$0xf]
  %v861 = vld [vmem:[%s2 + $0x320] sm:$0xf]
  %v862 = vld [vmem:[%s2 + $0x324] sm:$0xf]
  %v863 = vld [vmem:[%s2 + $0x328] sm:$0xf]
  %v864 = vld [vmem:[%s2 + $0x32c] sm:$0xf]
  %v865 = vld [vmem:[%s2 + $0x330] sm:$0xf]
  %v866 = vld [vmem:[%s2 + $0x334] sm:$0xf]
  %v867 = vld [vmem:[%s2 + $0x338] sm:$0xf]
  %v868 = vld [vmem:[%s2 + $0x33c] sm:$0xf]
  %v869 = vld [vmem:[%s2 + $0x340] sm:$0xf]
  %v870 = vld [vmem:[%s2 + $0x344] sm:$0xf]
  %v871 = vld [vmem:[%s2 + $0x348] sm:$0xf]
  %v872 = vld [vmem:[%s2 + $0x34c] sm:$0xf]
  %v873 = vld [vmem:[%s2 + $0x350] sm:$0xf]
  %v874 = vld [vmem:[%s2 + $0x354] sm:$0xf]
  %v875 = vld [vmem:[%s2 + $0x358] sm:$0xf]
  %v876 = vld [vmem:[%s2 + $0x35c] sm:$0xf]
  %v877 = vld [vmem:[%s2 + $0x360] sm:$0xf]
  %v878 = vld [vmem:[%s2 + $0x364] sm:$0xf]
  %v879 = vld [vmem:[%s2 + $0x368] sm:$0xf]
  %v880 = vld [vmem:[%s2 + $0x36c] sm:$0xf]
  %v881 = vld [vmem:[%s2 + $0x370] sm:$0xf]
  %v882 = vld [vmem:[%s2 + $0x374] sm:$0xf]
  %v883 = vld [vmem:[%s2 + $0x378] sm:$0xf]
  %v884 = vld [vmem:[%s2 + $0x37c] sm:$0xf]
  %v885 = vld [vmem:[%s2 + $0x380] sm:$0xf]
  %v886 = vld [vmem:[%s2 + $0x384] sm:$0xf]
  %v887 = vld [vmem:[%s2 + $0x388] sm:$0xf]
  %v888 = vld [vmem:[%s2 + $0x38c] sm:$0xf]
  %v889 = vld [vmem:[%s2 + $0x390] sm:$0xf]
  %v890 = vld [vmem:[%s2 + $0x394] sm:$0xf]
  %v891 = vld [vmem:[%s2 + $0x398] sm:$0xf]
  %v892 = vld [vmem:[%s2 + $0x39c] sm:$0xf]
  %v893 = vld [vmem:[%s2 + $0x3a0] sm:$0xf]
  %v894 = vld [vmem:[%s2 + $0x3a4] sm:$0xf]
  %v895 = vld [vmem:[%s2 + $0x3a8] sm:$0xf]
  %v896 = vld [vmem:[%s2 + $0x3ac] sm:$0xf]
  %v897 = vld [vmem:[%s2 + $0x3b0] sm:$0xf]
  %v898 = vld [vmem:[%s2 + $0x3b4] sm:$0xf]
  %v899 = vld [vmem:[%s2 + $0x3b8] sm:$0xf]
  %v900 = vld [vmem:[%s2 + $0x3bc] sm:$0xf]
  %v901 = vld [vmem:[%s2 + $0x3c0] sm:$0xf]
  %v902 = vld [vmem:[%s2 + $0x3c4] sm:$0xf]
  %v903 = vld [vmem:[%s2 + $0x3c8] sm:$0xf]
  %v904 = vld [vmem:[%s2 + $0x3cc] sm:$0xf]
  %v905 = vld [vmem:[%s2 + $0x3d0] sm:$0xf]
  %v906 = vld [vmem:[%s2 + $0x3d4] sm:$0xf]
  %v907 = vld [vmem:[%s2 + $0x3d8] sm:$0xf]
  %v908 = vld [vmem:[%s2 + $0x3dc] sm:$0xf]
  %v909 = vld [vmem:[%s2 + $0x3e0] sm:$0xf]
  %v910 = vld [vmem:[%s2 + $0x3e4] sm:$0xf]
  %v911 = vld [vmem:[%s2 + $0x3e8] sm:$0xf]
  %v912 = vld [vmem:[%s2 + $0x3ec] sm:$0xf]
  %v913 = vld [vmem:[%s2 + $0x3f0] sm:$0xf]
  %v914 = vld [vmem:[%s2 + $0x3f4] sm:$0xf]
  %v915 = vld [vmem:[%s2 + $0x3f8] sm:$0xf]
  %v916 = vld [vmem:[%s2 + $0x3fc] sm:$0xf]
  %v917 = vld [vmem:[%s3] sm:$0x1]
  %v919 = vlaneseq
  %v920 = vshrl.u32 %v919, 7
  %v921 = vsub.s32 0, %v920
  %v922 = vrot.slane %v917, %v921
  %v1180 = vunpack.c.l.b16 %v661
  %v1181 = vunpack.c.l.b16 %v662
  %v1182 = vunpack.c.l.b16 %v663
  %v1183 = vunpack.c.l.b16 %v664
  %v1184 = vunpack.c.l.b16 %v665
  %v1185 = vunpack.c.l.b16 %v666
  %v1186 = vunpack.c.l.b16 %v667
  %v1187 = vunpack.c.l.b16 %v668
  %v1188 = vunpack.c.l.b16 %v669
  %v1189 = vunpack.c.l.b16 %v670
  %v1190 = vunpack.c.l.b16 %v671
  %v1191 = vunpack.c.l.b16 %v672
  %v1192 = vunpack.c.l.b16 %v673
  %v1193 = vunpack.c.l.b16 %v674
  %v1194 = vunpack.c.l.b16 %v675
  %v1195 = vunpack.c.l.b16 %v676
  %v1196 = vunpack.c.l.b16 %v677
  %v1197 = vunpack.c.l.b16 %v678
  %v1198 = vunpack.c.l.b16 %v679
  %v1199 = vunpack.c.l.b16 %v680
  %v1200 = vunpack.c.l.b16 %v681
  %v1201 = vunpack.c.l.b16 %v682
  %v1202 = vunpack.c.l.b16 %v683
  %v1203 = vunpack.c.l.b16 %v684
  %v1204 = vunpack.c.l.b16 %v685
  %v1205 = vunpack.c.l.b16 %v686
  %v1206 = vunpack.c.l.b16 %v687
  %v1207 = vunpack.c.l.b16 %v688
  %v1208 = vunpack.c.l.b16 %v689
  %v1209 = vunpack.c.l.b16 %v690
  %v1210 = vunpack.c.l.b16 %v691
  %v1211 = vunpack.c.l.b16 %v692
  %v1212 = vunpack.c.l.b16 %v693
  %v1213 = vunpack.c.l.b16 %v694
  %v1214 = vunpack.c.l.b16 %v695
  %v1215 = vunpack.c.l.b16 %v696
  %v1216 = vunpack.c.l.b16 %v697
  %v1217 = vunpack.c.l.b16 %v698
  %v1218 = vunpack.c.l.b16 %v699
  %v1219 = vunpack.c.l.b16 %v700
  %v1220 = vunpack.c.l.b16 %v701
  %v1221 = vunpack.c.l.b16 %v702
  %v1222 = vunpack.c.l.b16 %v703
  %v1223 = vunpack.c.l.b16 %v704
  %v1224 = vunpack.c.l.b16 %v705
  %v1225 = vunpack.c.l.b16 %v706
  %v1226 = vunpack.c.l.b16 %v707
  %v1227 = vunpack.c.l.b16 %v708
  %v1228 = vunpack.c.l.b16 %v709
  %v1229 = vunpack.c.l.b16 %v710
  %v1230 = vunpack.c.l.b16 %v711
  %v1231 = vunpack.c.l.b16 %v712
  %v1232 = vunpack.c.l.b16 %v713
  %v1233 = vunpack.c.l.b16 %v714
  %v1234 = vunpack.c.l.b16 %v715
  %v1235 = vunpack.c.l.b16 %v716
  %v1236 = vunpack.c.l.b16 %v717
  %v1237 = vunpack.c.l.b16 %v718
  %v1238 = vunpack.c.l.b16 %v719
  %v1239 = vunpack.c.l.b16 %v720
  %v1240 = vunpack.c.l.b16 %v721
  %v1241 = vunpack.c.l.b16 %v722
  %v1242 = vunpack.c.l.b16 %v723
  %v1243 = vunpack.c.l.b16 %v724
  %v1244 = vunpack.c.l.b16 %v725
  %v1245 = vunpack.c.l.b16 %v726
  %v1246 = vunpack.c.l.b16 %v727
  %v1247 = vunpack.c.l.b16 %v728
  %v1248 = vunpack.c.l.b16 %v729
  %v1249 = vunpack.c.l.b16 %v730
  %v1250 = vunpack.c.l.b16 %v731
  %v1251 = vunpack.c.l.b16 %v732
  %v1252 = vunpack.c.l.b16 %v733
  %v1253 = vunpack.c.l.b16 %v734
  %v1254 = vunpack.c.l.b16 %v735
  %v1255 = vunpack.c.l.b16 %v736
  %v1256 = vunpack.c.l.b16 %v737
  %v1257 = vunpack.c.l.b16 %v738
  %v1258 = vunpack.c.l.b16 %v739
  %v1259 = vunpack.c.l.b16 %v740
  %v1260 = vunpack.c.l.b16 %v741
  %v1261 = vunpack.c.l.b16 %v742
  %v1262 = vunpack.c.l.b16 %v743
  %v1263 = vunpack.c.l.b16 %v744
  %v1264 = vunpack.c.l.b16 %v745
  %v1265 = vunpack.c.l.b16 %v746
  %v1266 = vunpack.c.l.b16 %v747
  %v1267 = vunpack.c.l.b16 %v748
  %v1268 = vunpack.c.l.b16 %v749
  %v1269 = vunpack.c.l.b16 %v750
  %v1270 = vunpack.c.l.b16 %v751
  %v1271 = vunpack.c.l.b16 %v752
  %v1272 = vunpack.c.l.b16 %v753
  %v1273 = vunpack.c.l.b16 %v754
  %v1274 = vunpack.c.l.b16 %v755
  %v1275 = vunpack.c.l.b16 %v756
  %v1276 = vunpack.c.l.b16 %v757
  %v1277 = vunpack.c.l.b16 %v758
  %v1278 = vunpack.c.l.b16 %v759
  %v1279 = vunpack.c.l.b16 %v760
  %v1280 = vunpack.c.l.b16 %v761
  %v1281 = vunpack.c.l.b16 %v762
  %v1282 = vunpack.c.l.b16 %v763
  %v1283 = vunpack.c.l.b16 %v764
  %v1284 = vunpack.c.l.b16 %v765
  %v1285 = vunpack.c.l.b16 %v766
  %v1286 = vunpack.c.l.b16 %v767
  %v1287 = vunpack.c.l.b16 %v768
  %v1288 = vunpack.c.l.b16 %v769
  %v1289 = vunpack.c.l.b16 %v770
  %v1290 = vunpack.c.l.b16 %v771
  %v1291 = vunpack.c.l.b16 %v772
  %v1292 = vunpack.c.l.b16 %v773
  %v1293 = vunpack.c.l.b16 %v774
  %v1294 = vunpack.c.l.b16 %v775
  %v1295 = vunpack.c.l.b16 %v776
  %v1296 = vunpack.c.l.b16 %v777
  %v1297 = vunpack.c.l.b16 %v778
  %v1298 = vunpack.c.l.b16 %v779
  %v1299 = vunpack.c.l.b16 %v780
  %v1300 = vunpack.c.l.b16 %v781
  %v1301 = vunpack.c.l.b16 %v782
  %v1302 = vunpack.c.l.b16 %v783
  %v1303 = vunpack.c.l.b16 %v784
  %v1304 = vunpack.c.l.b16 %v785
  %v1305 = vunpack.c.l.b16 %v786
  %v1306 = vunpack.c.l.b16 %v787
  %v1307 = vunpack.c.l.b16 %v788
  %v1308 = vunpack.c.l.b16 %v789
  %v1309 = vunpack.c.l.b16 %v790
  %v1310 = vunpack.c.l.b16 %v791
  %v1311 = vunpack.c.l.b16 %v792
  %v1312 = vunpack.c.l.b16 %v793
  %v1313 = vunpack.c.l.b16 %v794
  %v1314 = vunpack.c.l.b16 %v795
  %v1315 = vunpack.c.l.b16 %v796
  %v1316 = vunpack.c.l.b16 %v797
  %v1317 = vunpack.c.l.b16 %v798
  %v1318 = vunpack.c.l.b16 %v799
  %v1319 = vunpack.c.l.b16 %v800
  %v1320 = vunpack.c.l.b16 %v801
  %v1321 = vunpack.c.l.b16 %v802
  %v1322 = vunpack.c.l.b16 %v803
  %v1323 = vunpack.c.l.b16 %v804
  %v1324 = vunpack.c.l.b16 %v805
  %v1325 = vunpack.c.l.b16 %v806
  %v1326 = vunpack.c.l.b16 %v807
  %v1327 = vunpack.c.l.b16 %v808
  %v1328 = vunpack.c.l.b16 %v809
  %v1329 = vunpack.c.l.b16 %v810
  %v1330 = vunpack.c.l.b16 %v811
  %v1331 = vunpack.c.l.b16 %v812
  %v1332 = vunpack.c.l.b16 %v813
  %v1333 = vunpack.c.l.b16 %v814
  %v1334 = vunpack.c.l.b16 %v815
  %v1335 = vunpack.c.l.b16 %v816
  %v1336 = vunpack.c.l.b16 %v817
  %v1337 = vunpack.c.l.b16 %v818
  %v1338 = vunpack.c.l.b16 %v819
  %v1339 = vunpack.c.l.b16 %v820
  %v1340 = vunpack.c.l.b16 %v821
  %v1341 = vunpack.c.l.b16 %v822
  %v1342 = vunpack.c.l.b16 %v823
  %v1343 = vunpack.c.l.b16 %v824
  %v1344 = vunpack.c.l.b16 %v825
  %v1345 = vunpack.c.l.b16 %v826
  %v1346 = vunpack.c.l.b16 %v827
  %v1347 = vunpack.c.l.b16 %v828
  %v1348 = vunpack.c.l.b16 %v829
  %v1349 = vunpack.c.l.b16 %v830
  %v1350 = vunpack.c.l.b16 %v831
  %v1351 = vunpack.c.l.b16 %v832
  %v1352 = vunpack.c.l.b16 %v833
  %v1353 = vunpack.c.l.b16 %v834
  %v1354 = vunpack.c.l.b16 %v835
  %v1355 = vunpack.c.l.b16 %v836
  %v1356 = vunpack.c.l.b16 %v837
  %v1357 = vunpack.c.l.b16 %v838
  %v1358 = vunpack.c.l.b16 %v839
  %v1359 = vunpack.c.l.b16 %v840
  %v1360 = vunpack.c.l.b16 %v841
  %v1361 = vunpack.c.l.b16 %v842
  %v1362 = vunpack.c.l.b16 %v843
  %v1363 = vunpack.c.l.b16 %v844
  %v1364 = vunpack.c.l.b16 %v845
  %v1365 = vunpack.c.l.b16 %v846
  %v1366 = vunpack.c.l.b16 %v847
  %v1367 = vunpack.c.l.b16 %v848
  %v1368 = vunpack.c.l.b16 %v849
  %v1369 = vunpack.c.l.b16 %v850
  %v1370 = vunpack.c.l.b16 %v851
  %v1371 = vunpack.c.l.b16 %v852
  %v1372 = vunpack.c.l.b16 %v853
  %v1373 = vunpack.c.l.b16 %v854
  %v1374 = vunpack.c.l.b16 %v855
  %v1375 = vunpack.c.l.b16 %v856
  %v1376 = vunpack.c.l.b16 %v857
  %v1377 = vunpack.c.l.b16 %v858
  %v1378 = vunpack.c.l.b16 %v859
  %v1379 = vunpack.c.l.b16 %v860
  %v1380 = vunpack.c.l.b16 %v861
  %v1381 = vunpack.c.l.b16 %v862
  %v1382 = vunpack.c.l.b16 %v863
  %v1383 = vunpack.c.l.b16 %v864
  %v1384 = vunpack.c.l.b16 %v865
  %v1385 = vunpack.c.l.b16 %v866
  %v1386 = vunpack.c.l.b16 %v867
  %v1387 = vunpack.c.l.b16 %v868
  %v1388 = vunpack.c.l.b16 %v869
  %v1389 = vunpack.c.l.b16 %v870
  %v1390 = vunpack.c.l.b16 %v871
  %v1391 = vunpack.c.l.b16 %v872
  %v1392 = vunpack.c.l.b16 %v873
  %v1393 = vunpack.c.l.b16 %v874
  %v1394 = vunpack.c.l.b16 %v875
  %v1395 = vunpack.c.l.b16 %v876
  %v1396 = vunpack.c.l.b16 %v877
  %v1397 = vunpack.c.l.b16 %v878
  %v1398 = vunpack.c.l.b16 %v879
  %v1399 = vunpack.c.l.b16 %v880
  %v1400 = vunpack.c.l.b16 %v881
  %v1401 = vunpack.c.l.b16 %v882
  %v1402 = vunpack.c.l.b16 %v883
  %v1403 = vunpack.c.l.b16 %v884
  %v1404 = vunpack.c.l.b16 %v885
  %v1405 = vunpack.c.l.b16 %v886
  %v1406 = vunpack.c.l.b16 %v887
  %v1407 = vunpack.c.l.b16 %v888
  %v1408 = vunpack.c.l.b16 %v889
  %v1409 = vunpack.c.l.b16 %v890
  %v1410 = vunpack.c.l.b16 %v891
  %v1411 = vunpack.c.l.b16 %v892
  %v1412 = vunpack.c.l.b16 %v893
  %v1413 = vunpack.c.l.b16 %v894
  %v1414 = vunpack.c.l.b16 %v895
  %v1415 = vunpack.c.l.b16 %v896
  %v1416 = vunpack.c.l.b16 %v897
  %v1417 = vunpack.c.l.b16 %v898
  %v1418 = vunpack.c.l.b16 %v899
  %v1419 = vunpack.c.l.b16 %v900
  %v1420 = vunpack.c.l.b16 %v901
  %v1421 = vunpack.c.l.b16 %v902
  %v1422 = vunpack.c.l.b16 %v903
  %v1423 = vunpack.c.l.b16 %v904
  %v1424 = vunpack.c.l.b16 %v905
  %v1425 = vunpack.c.l.b16 %v906
  %v1426 = vunpack.c.l.b16 %v907
  %v1427 = vunpack.c.l.b16 %v908
  %v1428 = vunpack.c.l.b16 %v909
  %v1429 = vunpack.c.l.b16 %v910
  %v1430 = vunpack.c.l.b16 %v911
  %v1431 = vunpack.c.l.b16 %v912
  %v1432 = vunpack.c.l.b16 %v913
  %v1433 = vunpack.c.l.b16 %v914
  %v1434 = vunpack.c.l.b16 %v915
  %v1435 = vunpack.c.l.b16 %v916
  %v1436 = vpack.c.b16 %v1181, %v1180
  %v1437 = vpack.c.b16 %v1183, %v1182
  %v1438 = vpack.c.b16 %v1185, %v1184
  %v1439 = vpack.c.b16 %v1187, %v1186
  %v1440 = vpack.c.b16 %v1189, %v1188
  %v1441 = vpack.c.b16 %v1191, %v1190
  %v1442 = vpack.c.b16 %v1193, %v1192
  %v1443 = vpack.c.b16 %v1195, %v1194
  %v1444 = vpack.c.b16 %v1197, %v1196
  %v1445 = vpack.c.b16 %v1199, %v1198
  %v1446 = vpack.c.b16 %v1201, %v1200
  %v1447 = vpack.c.b16 %v1203, %v1202
  %v1448 = vpack.c.b16 %v1205, %v1204
  %v1449 = vpack.c.b16 %v1207, %v1206
  %v1450 = vpack.c.b16 %v1209, %v1208
  %v1451 = vpack.c.b16 %v1211, %v1210
  %v1452 = vpack.c.b16 %v1213, %v1212
  %v1453 = vpack.c.b16 %v1215, %v1214
  %v1454 = vpack.c.b16 %v1217, %v1216
  %v1455 = vpack.c.b16 %v1219, %v1218
  %v1456 = vpack.c.b16 %v1221, %v1220
  %v1457 = vpack.c.b16 %v1223, %v1222
  %v1458 = vpack.c.b16 %v1225, %v1224
  %v1459 = vpack.c.b16 %v1227, %v1226
  %v1460 = vpack.c.b16 %v1229, %v1228
  %v1461 = vpack.c.b16 %v1231, %v1230
  %v1462 = vpack.c.b16 %v1233, %v1232
  %v1463 = vpack.c.b16 %v1235, %v1234
  %v1464 = vpack.c.b16 %v1237, %v1236
  %v1465 = vpack.c.b16 %v1239, %v1238
  %v1466 = vpack.c.b16 %v1241, %v1240
  %v1467 = vpack.c.b16 %v1243, %v1242
  %v1468 = vpack.c.b16 %v1245, %v1244
  %v1469 = vpack.c.b16 %v1247, %v1246
  %v1470 = vpack.c.b16 %v1249, %v1248
  %v1471 = vpack.c.b16 %v1251, %v1250
  %v1472 = vpack.c.b16 %v1253, %v1252
  %v1473 = vpack.c.b16 %v1255, %v1254
  %v1474 = vpack.c.b16 %v1257, %v1256
  %v1475 = vpack.c.b16 %v1259, %v1258
  %v1476 = vpack.c.b16 %v1261, %v1260
  %v1477 = vpack.c.b16 %v1263, %v1262
  %v1478 = vpack.c.b16 %v1265, %v1264
  %v1479 = vpack.c.b16 %v1267, %v1266
  %v1480 = vpack.c.b16 %v1269, %v1268
  %v1481 = vpack.c.b16 %v1271, %v1270
  %v1482 = vpack.c.b16 %v1273, %v1272
  %v1483 = vpack.c.b16 %v1275, %v1274
  %v1484 = vpack.c.b16 %v1277, %v1276
  %v1485 = vpack.c.b16 %v1279, %v1278
  %v1486 = vpack.c.b16 %v1281, %v1280
  %v1487 = vpack.c.b16 %v1283, %v1282
  %v1488 = vpack.c.b16 %v1285, %v1284
  %v1489 = vpack.c.b16 %v1287, %v1286
  %v1490 = vpack.c.b16 %v1289, %v1288
  %v1491 = vpack.c.b16 %v1291, %v1290
  %v1492 = vpack.c.b16 %v1293, %v1292
  %v1493 = vpack.c.b16 %v1295, %v1294
  %v1494 = vpack.c.b16 %v1297, %v1296
  %v1495 = vpack.c.b16 %v1299, %v1298
  %v1496 = vpack.c.b16 %v1301, %v1300
  %v1497 = vpack.c.b16 %v1303, %v1302
  %v1498 = vpack.c.b16 %v1305, %v1304
  %v1499 = vpack.c.b16 %v1307, %v1306
  %v1500 = vpack.c.b16 %v1309, %v1308
  %v1501 = vpack.c.b16 %v1311, %v1310
  %v1502 = vpack.c.b16 %v1313, %v1312
  %v1503 = vpack.c.b16 %v1315, %v1314
  %v1504 = vpack.c.b16 %v1317, %v1316
  %v1505 = vpack.c.b16 %v1319, %v1318
  %v1506 = vpack.c.b16 %v1321, %v1320
  %v1507 = vpack.c.b16 %v1323, %v1322
  %v1508 = vpack.c.b16 %v1325, %v1324
  %v1509 = vpack.c.b16 %v1327, %v1326
  %v1510 = vpack.c.b16 %v1329, %v1328
  %v1511 = vpack.c.b16 %v1331, %v1330
  %v1512 = vpack.c.b16 %v1333, %v1332
  %v1513 = vpack.c.b16 %v1335, %v1334
  %v1514 = vpack.c.b16 %v1337, %v1336
  %v1515 = vpack.c.b16 %v1339, %v1338
  %v1516 = vpack.c.b16 %v1341, %v1340
  %v1517 = vpack.c.b16 %v1343, %v1342
  %v1518 = vpack.c.b16 %v1345, %v1344
  %v1519 = vpack.c.b16 %v1347, %v1346
  %v1520 = vpack.c.b16 %v1349, %v1348
  %v1521 = vpack.c.b16 %v1351, %v1350
  %v1522 = vpack.c.b16 %v1353, %v1352
  %v1523 = vpack.c.b16 %v1355, %v1354
  %v1524 = vpack.c.b16 %v1357, %v1356
  %v1525 = vpack.c.b16 %v1359, %v1358
  %v1526 = vpack.c.b16 %v1361, %v1360
  %v1527 = vpack.c.b16 %v1363, %v1362
  %v1528 = vpack.c.b16 %v1365, %v1364
  %v1529 = vpack.c.b16 %v1367, %v1366
  %v1530 = vpack.c.b16 %v1369, %v1368
  %v1531 = vpack.c.b16 %v1371, %v1370
  %v1532 = vpack.c.b16 %v1373, %v1372
  %v1533 = vpack.c.b16 %v1375, %v1374
  %v1534 = vpack.c.b16 %v1377, %v1376
  %v1535 = vpack.c.b16 %v1379, %v1378
  %v1536 = vpack.c.b16 %v1381, %v1380
  %v1537 = vpack.c.b16 %v1383, %v1382
  %v1538 = vpack.c.b16 %v1385, %v1384
  %v1539 = vpack.c.b16 %v1387, %v1386
  %v1540 = vpack.c.b16 %v1389, %v1388
  %v1541 = vpack.c.b16 %v1391, %v1390
  %v1542 = vpack.c.b16 %v1393, %v1392
  %v1543 = vpack.c.b16 %v1395, %v1394
  %v1544 = vpack.c.b16 %v1397, %v1396
  %v1545 = vpack.c.b16 %v1399, %v1398
  %v1546 = vpack.c.b16 %v1401, %v1400
  %v1547 = vpack.c.b16 %v1403, %v1402
  %v1548 = vpack.c.b16 %v1405, %v1404
  %v1549 = vpack.c.b16 %v1407, %v1406
  %v1550 = vpack.c.b16 %v1409, %v1408
  %v1551 = vpack.c.b16 %v1411, %v1410
  %v1552 = vpack.c.b16 %v1413, %v1412
  %v1553 = vpack.c.b16 %v1415, %v1414
  %v1554 = vpack.c.b16 %v1417, %v1416
  %v1555 = vpack.c.b16 %v1419, %v1418
  %v1556 = vpack.c.b16 %v1421, %v1420
  %v1557 = vpack.c.b16 %v1423, %v1422
  %v1558 = vpack.c.b16 %v1425, %v1424
  %v1559 = vpack.c.b16 %v1427, %v1426
  %v1560 = vpack.c.b16 %v1429, %v1428
  %v1561 = vpack.c.b16 %v1431, %v1430
  %v1562 = vpack.c.b16 %v1433, %v1432
  %v1563 = vpack.c.b16 %v1435, %v1434
  %1692 = vmatprep.subr.bf16.mxu0 0
  %1693 = vmatpush1.bf16.msra.mxu0 %v1436
  %1694 = vmatprep.subr.bf16.mxu0 0
  %1695 = vmatpush1.bf16.msra.mxu0 %v1437
  %1696 = vmatprep.subr.bf16.mxu0 0
  %1697 = vmatpush1.bf16.msra.mxu0 %v1438
  %1698 = vmatprep.subr.bf16.mxu0 0
  %1699 = vmatpush1.bf16.msra.mxu0 %v1439
  %1700 = vmatprep.subr.bf16.mxu0 0
  %1701 = vmatpush1.bf16.msra.mxu0 %v1440
  %1702 = vmatprep.subr.bf16.mxu0 0
  %1703 = vmatpush1.bf16.msra.mxu0 %v1441
  %1704 = vmatprep.subr.bf16.mxu0 0
  %1705 = vmatpush1.bf16.msra.mxu0 %v1442
  %1706 = vmatprep.subr.bf16.mxu0 0
  %1707 = vmatpush1.bf16.msra.mxu0 %v1443
  %1708 = vmatprep.subr.bf16.mxu0 0
  %1709 = vmatpush1.bf16.msra.mxu0 %v1444
  %1710 = vmatprep.subr.bf16.mxu0 0
  %1711 = vmatpush1.bf16.msra.mxu0 %v1445
  %1712 = vmatprep.subr.bf16.mxu0 0
  %1713 = vmatpush1.bf16.msra.mxu0 %v1446
  %1714 = vmatprep.subr.bf16.mxu0 0
  %1715 = vmatpush1.bf16.msra.mxu0 %v1447
  %1716 = vmatprep.subr.bf16.mxu0 0
  %1717 = vmatpush1.bf16.msra.mxu0 %v1448
  %1718 = vmatprep.subr.bf16.mxu0 0
  %1719 = vmatpush1.bf16.msra.mxu0 %v1449
  %1720 = vmatprep.subr.bf16.mxu0 0
  %1721 = vmatpush1.bf16.msra.mxu0 %v1450
  %1722 = vmatprep.subr.bf16.mxu0 0
  %1723 = vmatpush1.bf16.msra.mxu0 %v1451
  %1724 = vmatprep.mubr.bf16.mxu0 %v646
  %1725 = vmatmul.mubr.bf16.gmra.mrb[0].mxu0 %v645
  %v1726 = vpop.f32.mrb[0].mxu0
  %v1727 = vadd.f32 %v922, %v1726
  %v1728 = vpop.f32.mrb[0].mxu0
  %v1729 = vpop.f32.mrb[0].mxu0
  %v1730 = vpop.f32.mrb[0].mxu0
  %1731 = vdwg.mxu0
  %1732 = vmatprep.subr.bf16.mxu0 0
  %1733 = vmatpush1.bf16.msra.mxu0 %v1452
  %1734 = vmatprep.subr.bf16.mxu0 0
  %1735 = vmatpush1.bf16.msra.mxu0 %v1453
  %1736 = vmatprep.subr.bf16.mxu0 0
  %1737 = vmatpush1.bf16.msra.mxu0 %v1454
  %1738 = vmatprep.subr.bf16.mxu0 0
  %1739 = vmatpush1.bf16.msra.mxu0 %v1455
  %1740 = vmatprep.subr.bf16.mxu0 0
  %1741 = vmatpush1.bf16.msra.mxu0 %v1456
  %1742 = vmatprep.subr.bf16.mxu0 0
  %1743 = vmatpush1.bf16.msra.mxu0 %v1457
  %1744 = vmatprep.subr.bf16.mxu0 0
  %1745 = vmatpush1.bf16.msra.mxu0 %v1458
  %1746 = vmatprep.subr.bf16.mxu0 0
  %1747 = vmatpush1.bf16.msra.mxu0 %v1459
  %1748 = vmatprep.subr.bf16.mxu0 0
  %1749 = vmatpush1.bf16.msra.mxu0 %v1460
  %1750 = vmatprep.subr.bf16.mxu0 0
  %1751 = vmatpush1.bf16.msra.mxu0 %v1461
  %1752 = vmatprep.subr.bf16.mxu0 0
  %1753 = vmatpush1.bf16.msra.mxu0 %v1462
  %1754 = vmatprep.subr.bf16.mxu0 0
  %1755 = vmatpush1.bf16.msra.mxu0 %v1463
  %1756 = vmatprep.subr.bf16.mxu0 0
  %1757 = vmatpush1.bf16.msra.mxu0 %v1464
  %1758 = vmatprep.subr.bf16.mxu0 0
  %1759 = vmatpush1.bf16.msra.mxu0 %v1465
  %1760 = vmatprep.subr.bf16.mxu0 0
  %1761 = vmatpush1.bf16.msra.mxu0 %v1466
  %1762 = vmatprep.subr.bf16.mxu0 0
  %1763 = vmatpush1.bf16.msra.mxu0 %v1467
  %1764 = vmatprep.mubr.bf16.mxu0 %v648
  %1765 = vmatmul.mubr.bf16.gmra.mrb[0].mxu0 %v647
  %v1766 = vpop.f32.mrb[0].mxu0
  %v1767 = vadd.f32 %v1727, %v1766
  %v1768 = vpop.f32.mrb[0].mxu0
  %v1769 = vpop.f32.mrb[0].mxu0
  %v1770 = vpop.f32.mrb[0].mxu0
  %1771 = vdwg.mxu0
  %1772 = vmatprep.subr.bf16.mxu0 0
  %1773 = vmatpush1.bf16.msra.mxu0 %v1468
  %1774 = vmatprep.subr.bf16.mxu0 0
  %1775 = vmatpush1.bf16.msra.mxu0 %v1469
  %1776 = vmatprep.subr.bf16.mxu0 0
  %1777 = vmatpush1.bf16.msra.mxu0 %v1470
  %1778 = vmatprep.subr.bf16.mxu0 0
  %1779 = vmatpush1.bf16.msra.mxu0 %v1471
  %1780 = vmatprep.subr.bf16.mxu0 0
  %1781 = vmatpush1.bf16.msra.mxu0 %v1472
  %1782 = vmatprep.subr.bf16.mxu0 0
  %1783 = vmatpush1.bf16.msra.mxu0 %v1473
  %1784 = vmatprep.subr.bf16.mxu0 0
  %1785 = vmatpush1.bf16.msra.mxu0 %v1474
  %1786 = vmatprep.subr.bf16.mxu0 0
  %1787 = vmatpush1.bf16.msra.mxu0 %v1475
  %1788 = vmatprep.subr.bf16.mxu0 0
  %1789 = vmatpush1.bf16.msra.mxu0 %v1476
  %1790 = vmatprep.subr.bf16.mxu0 0
  %1791 = vmatpush1.bf16.msra.mxu0 %v1477
  %1792 = vmatprep.subr.bf16.mxu0 0
  %1793 = vmatpush1.bf16.msra.mxu0 %v1478
  %1794 = vmatprep.subr.bf16.mxu0 0
  %1795 = vmatpush1.bf16.msra.mxu0 %v1479
  %1796 = vmatprep.subr.bf16.mxu0 0
  %1797 = vmatpush1.bf16.msra.mxu0 %v1480
  %1798 = vmatprep.subr.bf16.mxu0 0
  %1799 = vmatpush1.bf16.msra.mxu0 %v1481
  %1800 = vmatprep.subr.bf16.mxu0 0
  %1801 = vmatpush1.bf16.msra.mxu0 %v1482
  %1802 = vmatprep.subr.bf16.mxu0 0
  %1803 = vmatpush1.bf16.msra.mxu0 %v1483
  %1804 = vmatprep.mubr.bf16.mxu0 %v650
  %1805 = vmatmul.mubr.bf16.gmra.mrb[0].mxu0 %v649
  %v1806 = vpop.f32.mrb[0].mxu0
  %v1807 = vadd.f32 %v1767, %v1806
  %v1808 = vpop.f32.mrb[0].mxu0
  %v1809 = vpop.f32.mrb[0].mxu0
  %v1810 = vpop.f32.mrb[0].mxu0
  %1811 = vdwg.mxu0
  %1812 = vmatprep.subr.bf16.mxu0 0
  %1813 = vmatpush1.bf16.msra.mxu0 %v1484
  %1814 = vmatprep.subr.bf16.mxu0 0
  %1815 = vmatpush1.bf16.msra.mxu0 %v1485
  %1816 = vmatprep.subr.bf16.mxu0 0
  %1817 = vmatpush1.bf16.msra.mxu0 %v1486
  %1818 = vmatprep.subr.bf16.mxu0 0
  %1819 = vmatpush1.bf16.msra.mxu0 %v1487
  %1820 = vmatprep.subr.bf16.mxu0 0
  %1821 = vmatpush1.bf16.msra.mxu0 %v1488
  %1822 = vmatprep.subr.bf16.mxu0 0
  %1823 = vmatpush1.bf16.msra.mxu0 %v1489
  %1824 = vmatprep.subr.bf16.mxu0 0
  %1825 = vmatpush1.bf16.msra.mxu0 %v1490
  %1826 = vmatprep.subr.bf16.mxu0 0
  %1827 = vmatpush1.bf16.msra.mxu0 %v1491
  %1828 = vmatprep.subr.bf16.mxu0 0
  %1829 = vmatpush1.bf16.msra.mxu0 %v1492
  %1830 = vmatprep.subr.bf16.mxu0 0
  %1831 = vmatpush1.bf16.msra.mxu0 %v1493
  %1832 = vmatprep.subr.bf16.mxu0 0
  %1833 = vmatpush1.bf16.msra.mxu0 %v1494
  %1834 = vmatprep.subr.bf16.mxu0 0
  %1835 = vmatpush1.bf16.msra.mxu0 %v1495
  %1836 = vmatprep.subr.bf16.mxu0 0
  %1837 = vmatpush1.bf16.msra.mxu0 %v1496
  %1838 = vmatprep.subr.bf16.mxu0 0
  %1839 = vmatpush1.bf16.msra.mxu0 %v1497
  %1840 = vmatprep.subr.bf16.mxu0 0
  %1841 = vmatpush1.bf16.msra.mxu0 %v1498
  %1842 = vmatprep.subr.bf16.mxu0 0
  %1843 = vmatpush1.bf16.msra.mxu0 %v1499
  %1844 = vmatprep.mubr.bf16.mxu0 %v652
  %1845 = vmatmul.mubr.bf16.gmra.mrb[0].mxu0 %v651
  %v1846 = vpop.f32.mrb[0].mxu0
  %v1847 = vadd.f32 %v1807, %v1846
  %v1848 = vpop.f32.mrb[0].mxu0
  %v1849 = vpop.f32.mrb[0].mxu0
  %v1850 = vpop.f32.mrb[0].mxu0
  %1851 = vdwg.mxu0
  %1852 = vmatprep.subr.bf16.mxu0 0
  %1853 = vmatpush1.bf16.msra.mxu0 %v1500
  %1854 = vmatprep.subr.bf16.mxu0 0
  %1855 = vmatpush1.bf16.msra.mxu0 %v1501
  %1856 = vmatprep.subr.bf16.mxu0 0
  %1857 = vmatpush1.bf16.msra.mxu0 %v1502
  %1858 = vmatprep.subr.bf16.mxu0 0
  %1859 = vmatpush1.bf16.msra.mxu0 %v1503
  %1860 = vmatprep.subr.bf16.mxu0 0
  %1861 = vmatpush1.bf16.msra.mxu0 %v1504
  %1862 = vmatprep.subr.bf16.mxu0 0
  %1863 = vmatpush1.bf16.msra.mxu0 %v1505
  %1864 = vmatprep.subr.bf16.mxu0 0
  %1865 = vmatpush1.bf16.msra.mxu0 %v1506
  %1866 = vmatprep.subr.bf16.mxu0 0
  %1867 = vmatpush1.bf16.msra.mxu0 %v1507
  %1868 = vmatprep.subr.bf16.mxu0 0
  %1869 = vmatpush1.bf16.msra.mxu0 %v1508
  %1870 = vmatprep.subr.bf16.mxu0 0
  %1871 = vmatpush1.bf16.msra.mxu0 %v1509
  %1872 = vmatprep.subr.bf16.mxu0 0
  %1873 = vmatpush1.bf16.msra.mxu0 %v1510
  %1874 = vmatprep.subr.bf16.mxu0 0
  %1875 = vmatpush1.bf16.msra.mxu0 %v1511
  %1876 = vmatprep.subr.bf16.mxu0 0
  %1877 = vmatpush1.bf16.msra.mxu0 %v1512
  %1878 = vmatprep.subr.bf16.mxu0 0
  %1879 = vmatpush1.bf16.msra.mxu0 %v1513
  %1880 = vmatprep.subr.bf16.mxu0 0
  %1881 = vmatpush1.bf16.msra.mxu0 %v1514
  %1882 = vmatprep.subr.bf16.mxu0 0
  %1883 = vmatpush1.bf16.msra.mxu0 %v1515
  %1884 = vmatprep.mubr.bf16.mxu0 %v654
  %1885 = vmatmul.mubr.bf16.gmra.mrb[0].mxu0 %v653
  %v1886 = vpop.f32.mrb[0].mxu0
  %v1887 = vadd.f32 %v1847, %v1886
  %v1888 = vpop.f32.mrb[0].mxu0
  %v1889 = vpop.f32.mrb[0].mxu0
  %v1890 = vpop.f32.mrb[0].mxu0
  %1891 = vdwg.mxu0
  %1892 = vmatprep.subr.bf16.mxu0 0
  %1893 = vmatpush1.bf16.msra.mxu0 %v1516
  %1894 = vmatprep.subr.bf16.mxu0 0
  %1895 = vmatpush1.bf16.msra.mxu0 %v1517
  %1896 = vmatprep.subr.bf16.mxu0 0
  %1897 = vmatpush1.bf16.msra.mxu0 %v1518
  %1898 = vmatprep.subr.bf16.mxu0 0
  %1899 = vmatpush1.bf16.msra.mxu0 %v1519
  %1900 = vmatprep.subr.bf16.mxu0 0
  %1901 = vmatpush1.bf16.msra.mxu0 %v1520
  %1902 = vmatprep.subr.bf16.mxu0 0
  %1903 = vmatpush1.bf16.msra.mxu0 %v1521
  %1904 = vmatprep.subr.bf16.mxu0 0
  %1905 = vmatpush1.bf16.msra.mxu0 %v1522
  %1906 = vmatprep.subr.bf16.mxu0 0
  %1907 = vmatpush1.bf16.msra.mxu0 %v1523
  %1908 = vmatprep.subr.bf16.mxu0 0
  %1909 = vmatpush1.bf16.msra.mxu0 %v1524
  %1910 = vmatprep.subr.bf16.mxu0 0
  %1911 = vmatpush1.bf16.msra.mxu0 %v1525
  %1912 = vmatprep.subr.bf16.mxu0 0
  %1913 = vmatpush1.bf16.msra.mxu0 %v1526
  %1914 = vmatprep.subr.bf16.mxu0 0
  %1915 = vmatpush1.bf16.msra.mxu0 %v1527
  %1916 = vmatprep.subr.bf16.mxu0 0
  %1917 = vmatpush1.bf16.msra.mxu0 %v1528
  %1918 = vmatprep.subr.bf16.mxu0 0
  %1919 = vmatpush1.bf16.msra.mxu0 %v1529
  %1920 = vmatprep.subr.bf16.mxu0 0
  %1921 = vmatpush1.bf16.msra.mxu0 %v1530
  %1922 = vmatprep.subr.bf16.mxu0 0
  %1923 = vmatpush1.bf16.msra.mxu0 %v1531
  %1924 = vmatprep.mubr.bf16.mxu0 %v656
  %1925 = vmatmul.mubr.bf16.gmra.mrb[0].mxu0 %v655
  %v1926 = vpop.f32.mrb[0].mxu0
  %v1927 = vadd.f32 %v1887, %v1926
  %v1928 = vpop.f32.mrb[0].mxu0
  %v1929 = vpop.f32.mrb[0].mxu0
  %v1930 = vpop.f32.mrb[0].mxu0
  %1931 = vdwg.mxu0
  %1932 = vmatprep.subr.bf16.mxu0 0
  %1933 = vmatpush1.bf16.msra.mxu0 %v1532
  %1934 = vmatprep.subr.bf16.mxu0 0
  %1935 = vmatpush1.bf16.msra.mxu0 %v1533
  %1936 = vmatprep.subr.bf16.mxu0 0
  %1937 = vmatpush1.bf16.msra.mxu0 %v1534
  %1938 = vmatprep.subr.bf16.mxu0 0
  %1939 = vmatpush1.bf16.msra.mxu0 %v1535
  %1940 = vmatprep.subr.bf16.mxu0 0
  %1941 = vmatpush1.bf16.msra.mxu0 %v1536
  %1942 = vmatprep.subr.bf16.mxu0 0
  %1943 = vmatpush1.bf16.msra.mxu0 %v1537
  %1944 = vmatprep.subr.bf16.mxu0 0
  %1945 = vmatpush1.bf16.msra.mxu0 %v1538
  %1946 = vmatprep.subr.bf16.mxu0 0
  %1947 = vmatpush1.bf16.msra.mxu0 %v1539
  %1948 = vmatprep.subr.bf16.mxu0 0
  %1949 = vmatpush1.bf16.msra.mxu0 %v1540
  %1950 = vmatprep.subr.bf16.mxu0 0
  %1951 = vmatpush1.bf16.msra.mxu0 %v1541
  %1952 = vmatprep.subr.bf16.mxu0 0
  %1953 = vmatpush1.bf16.msra.mxu0 %v1542
  %1954 = vmatprep.subr.bf16.mxu0 0
  %1955 = vmatpush1.bf16.msra.mxu0 %v1543
  %1956 = vmatprep.subr.bf16.mxu0 0
  %1957 = vmatpush1.bf16.msra.mxu0 %v1544
  %1958 = vmatprep.subr.bf16.mxu0 0
  %1959 = vmatpush1.bf16.msra.mxu0 %v1545
  %1960 = vmatprep.subr.bf16.mxu0 0
  %1961 = vmatpush1.bf16.msra.mxu0 %v1546
  %1962 = vmatprep.subr.bf16.mxu0 0
  %1963 = vmatpush1.bf16.msra.mxu0 %v1547
  %1964 = vmatprep.mubr.bf16.mxu0 %v658
  %1965 = vmatmul.mubr.bf16.gmra.mrb[0].mxu0 %v657
  %v1966 = vpop.f32.mrb[0].mxu0
  %v1967 = vadd.f32 %v1927, %v1966
  %v1968 = vpop.f32.mrb[0].mxu0
  %v1969 = vpop.f32.mrb[0].mxu0
  %v1970 = vpop.f32.mrb[0].mxu0
  %1971 = vdwg.mxu0
  %1972 = vmatprep.subr.bf16.mxu0 0
  %1973 = vmatpush1.bf16.msra.mxu0 %v1548
  %1974 = vmatprep.subr.bf16.mxu0 0
  %1975 = vmatpush1.bf16.msra.mxu0 %v1549
  %1976 = vmatprep.subr.bf16.mxu0 0
  %1977 = vmatpush1.bf16.msra.mxu0 %v1550
  %1978 = vmatprep.subr.bf16.mxu0 0
  %1979 = vmatpush1.bf16.msra.mxu0 %v1551
  %1980 = vmatprep.subr.bf16.mxu0 0
  %1981 = vmatpush1.bf16.msra.mxu0 %v1552
  %1982 = vmatprep.subr.bf16.mxu0 0
  %1983 = vmatpush1.bf16.msra.mxu0 %v1553
  %1984 = vmatprep.subr.bf16.mxu0 0
  %1985 = vmatpush1.bf16.msra.mxu0 %v1554
  %1986 = vmatprep.subr.bf16.mxu0 0
  %1987 = vmatpush1.bf16.msra.mxu0 %v1555
  %1988 = vmatprep.subr.bf16.mxu0 0
  %1989 = vmatpush1.bf16.msra.mxu0 %v1556
  %1990 = vmatprep.subr.bf16.mxu0 0
  %1991 = vmatpush1.bf16.msra.mxu0 %v1557
  %1992 = vmatprep.subr.bf16.mxu0 0
  %1993 = vmatpush1.bf16.msra.mxu0 %v1558
  %1994 = vmatprep.subr.bf16.mxu0 0
  %1995 = vmatpush1.bf16.msra.mxu0 %v1559
  %1996 = vmatprep.subr.bf16.mxu0 0
  %1997 = vmatpush1.bf16.msra.mxu0 %v1560
  %1998 = vmatprep.subr.bf16.mxu0 0
  %1999 = vmatpush1.bf16.msra.mxu0 %v1561
  %2000 = vmatprep.subr.bf16.mxu0 0
  %2001 = vmatpush1.bf16.msra.mxu0 %v1562
  %2002 = vmatprep.subr.bf16.mxu0 0
  %2003 = vmatpush1.bf16.msra.mxu0 %v1563
  %2004 = vmatprep.mubr.bf16.mxu0 %v660
  %2005 = vmatmul.mubr.bf16.gmra.mrb[0].mxu0 %v659
  %v2006 = vpop.f32.mrb[0].mxu0
  %v2007 = vadd.f32 %v1967, %v2006
  %v2008 = vpop.f32.mrb[0].mxu0
  %v2009 = vpop.f32.mrb[0].mxu0
  %v2010 = vpop.f32.mrb[0].mxu0
  %2011 = vdwg.mxu0
  %2012 = vst [vmem:[%s4] sm:$0xff] %v2007
  // Predicated region
  $region18: #{ensemble_forward.1} parent=0 // pred_check
    _
  $region19: #{ensemble_forward.1} parent=0 // pred_check_branch
    %2014 = sbr.rel (0) target = $region21
  $region20: #{ensemble_forward.1} parent=0 // pred_region
    _
  $region21: #{ensemble_forward.1} parent=0 // pred_fallthru
    _
  // Predicated region
  $region22: #{ensemble_forward.1} parent=0 // pred_check
    _
  $region23: #{ensemble_forward.1} parent=0 // pred_check_branch
    %2016 = sbr.rel (0) target = $region25
  $region24: #{ensemble_forward.1} parent=0 // pred_region
    _
  $region25: #{ensemble_forward.1} parent=0 // pred_fallthru
    _

</llo_original>
